<compile_context>
chip_gen: v6e
topology: v6e:2x2x1
jax: 0.10.0
libtpu: 0.0.40
codegen_flags: <defaults>
</compile_context>

<pallas_src>
import functools

import numpy as np

import jax
import jax.numpy as jnp
from jax import lax
from jax.experimental import pallas as pl
from jax.experimental.pallas import tpu as pltpu


def conv_tap_kernel(x_ref, w_ref, b_ref, mask_ref, o_ref, *, KH, KW, padding, W):
    """Stride-1 'same' Conv2d for a block of B batch elements.

    x_ref    : (B, Cin, H*W)       lane-dense flattened NCHW input block
    w_ref    : (KH*KW, Cout, Cin)  per-tap weight matrices (tap t = kh*KW+kw)
    b_ref    : (Cout, 1)           bias
    mask_ref : (KH*KW, H*W)        1.0 where the shifted tap read is in-bounds
    o_ref    : (B, Cout, H*W)      lane-dense output block (NCHW element order)
    """
    B, Cin, HW = x_ref.shape
    Cout = o_ref.shape[1]

    w_all = w_ref[...]       # (KH*KW, Cout, Cin) — tiny, stays in registers
    masks = mask_ref[...]    # (KH*KW, HW)
    bias = b_ref[...]        # (Cout, 1), lane-broadcasts in the final add

    # Static per-tap schedule: weight index + constant lane rotation.
    # For output flat index m, tap (kh, kw) reads input flat index m + s with
    # s = (kh - padding)*W + (kw - padding); roll by (-s) % HW realises
    # result[m] = x[(m + s) % HW], and the mask zeroes every wrong-row /
    # out-of-image (incl. wrap-around) read.
    taps = []
    for kh in range(KH):
        for kw in range(KW):
            s = (kh - padding) * W + (kw - padding)
            taps.append((kh * KW + kw, (-s) % HW))

    for b in range(B):                       # B is 1 or 2 -> fully unrolled
        xb = x_ref[b]                        # (Cin, HW), ~2 vregs
        acc = jnp.zeros((Cout, HW), jnp.float32)
        for t, shift in taps:
            if shift == 0:                   # centre tap: no rotate, no mask
                tap_in = xb
            else:
                tap_in = pltpu.roll(xb, shift, axis=1) * masks[t:t + 1]
            # KH*KW small (Cout,Cin)x(Cin,HW) MXU matmuls accumulating into a
            # single f32 tile (in-place MRB accumulation on v7x).
            acc = acc + jnp.dot(w_all[t], tap_in,
                                preferred_element_type=jnp.float32)
        o_ref[b] = (acc + bias).astype(o_ref.dtype)   # 256-lane-dense store


def _tap_masks(H, W, KH, KW, padding, dtype):
    """Per-tap in-bounds masks on the flat HxW grid (host-side constant).

    mask[t, h*W + w] = 1.0 iff 0 <= h + kh - padding < H and
                               0 <= w + kw - padding < W, with t = kh*KW + kw.
    """
    masks = np.zeros((KH * KW, H * W), dtype=np.float32)
    for kh in range(KH):
        for kw in range(KW):
            dh, dw = kh - padding, kw - padding
            m2d = np.zeros((H, W), dtype=np.float32)
            h0, h1 = max(0, -dh), min(H, H - dh)
            w0, w1 = max(0, -dw), min(W, W - dw)
            if h0 < h1 and w0 < w1:
                m2d[h0:h1, w0:w1] = 1.0
            masks[kh * KW + kw] = m2d.reshape(-1)
    return jnp.asarray(masks, dtype=dtype)


def _num_grid_blocks(n):
    """Batch-grid blocks: 2 on dual-TensorCore chips (v7x) so both cores get
    work; otherwise 1 (fold the whole batch into a single grid step — per-step
    overhead ~0.35us dominates the sub-us body on single-TC v5e/v6e)."""
    try:
        kind = jax.devices()[0].device_kind.lower()
    except Exception:
        kind = ""
    if "v7" in kind and n >= 2 and n % 2 == 0:
        return 2
    return 1


def subpixel_conv2d_pallas(x_nchw, weight_oihw, bias, padding):
    """Conv2d(stride=1, padding=padding) matching PyTorch semantics (NCHW)."""
    N, Cin, H, W = x_nchw.shape
    Cout, _, KH, KW = weight_oihw.shape
    if (2 * padding != KH - 1) or (2 * padding != KW - 1):
        # TODO(synk): non-'same' padding (Hout != H) needs an im2col-scratch
        # variant; the constant-lane-shift trick requires Hout==H, Wout==W.
        raise NotImplementedError(
            "subpixel_conv2d_pallas only supports 'same' convolutions "
            "(2*padding == kernel_size - 1)")
    HW = H * W

    # Parameter glue (tiny, once per call, plain JAX / host constants).
    w_taps = jnp.transpose(weight_oihw, (2, 3, 0, 1)).reshape(KH * KW, Cout, Cin)
    b_col = bias.reshape(Cout, 1)
    masks = _tap_masks(H, W, KH, KW, padding, x_nchw.dtype)
    x_flat = x_nchw.reshape(N, Cin, HW)            # free row-major reshape

    G = _num_grid_blocks(N)
    B = N // G

    kernel = functools.partial(conv_tap_kernel, KH=KH, KW=KW,
                               padding=padding, W=W)

    out = pl.pallas_call(
        kernel,
        out_shape=jax.ShapeDtypeStruct((N, Cout, HW), x_nchw.dtype),
        grid=(G,),
        in_specs=[
            pl.BlockSpec((B, Cin, HW), lambda g: (g, 0, 0)),
            pl.BlockSpec((KH * KW, Cout, Cin), lambda g: (0, 0, 0)),
            pl.BlockSpec((Cout, 1), lambda g: (0, 0)),
            pl.BlockSpec((KH * KW, HW), lambda g: (0, 0)),
        ],
        out_specs=pl.BlockSpec((B, Cout, HW), lambda g: (g, 0, 0)),
        compiler_params=pltpu.CompilerParams(
            dimension_semantics=("parallel",)),
    )(x_flat, w_taps, b_col, masks)

    # (N, Cout, H*W) is already NCHW element order -> free reshape.
    return out.reshape(N, Cout, H, W)


def make_params(key, num_channels, upscale_ratio, kernel_size):
    """Deterministic weight_norm(Conv2d) parameters: v, g, bias."""
    channels_out = 3 * upscale_ratio ** 2
    k_v, k_g, k_b = jax.random.split(key, 3)
    fan_in = num_channels * kernel_size * kernel_size
    bound = 1.0 / (fan_in ** 0.5)
    v = jax.random.uniform(
        k_v, (channels_out, num_channels, kernel_size, kernel_size),
        jnp.float32, -bound, bound)
    g = jax.random.uniform(k_g, (channels_out, 1, 1, 1), jnp.float32, 0.5, 1.5)
    bias = jax.random.uniform(k_b, (channels_out,), jnp.float32, -bound, bound)
    return v, g, bias


def weight_norm_weight(v, g):
    # PyTorch weight_norm with dim=0: norm over (Cin, KH, KW) per output channel.
    norm = jnp.sqrt(jnp.sum(v * v, axis=(1, 2, 3), keepdims=True))
    return g * v / norm


@functools.partial(jax.jit, static_argnames=("padding",))
def forward(x, v, g, bias, padding):
    weight = weight_norm_weight(v, g)
    return subpixel_conv2d_pallas(x, weight, bias, padding)


if __name__ == "__main__":
    num_channels, upscale_ratio, kernel_size, padding = 4, 2, 3, 1
    N, H, W = 2, 16, 16

    key = jax.random.PRNGKey(0)
    k_x, k_p = jax.random.split(key)
    x = jax.random.normal(k_x, (N, num_channels, H, W), jnp.float32)
    v, g, bias = make_params(k_p, num_channels, upscale_ratio, kernel_size)

    out = forward(x, v, g, bias, padding)
    jax.block_until_ready(out)

    # Cross-check against XLA's conv (same weight-norm weight).
    weight = weight_norm_weight(v, g)
    ref = lax.conv_general_dilated(
        x, weight, window_strides=(1, 1),
        padding=[(padding, padding), (padding, padding)],
        dimension_numbers=("NCHW", "OIHW", "NCHW"),
    ) + bias.reshape(1, -1, 1, 1)

    assert out.shape == (N, 3 * upscale_ratio ** 2, H, W), out.shape
    assert jnp.allclose(out, ref, atol=1e-4, rtol=1e-4), float(
        jnp.max(jnp.abs(out - ref)))

    print("KERNEL_OK")
</pallas_src>

<mosaic_0001>
module attributes {stable_mosaic.version = 11 : i64} {
  func.func @conv_tap_kernel(%arg0: i32, %arg1: memref<2x4x256xf32, #tpu.memory_space<vmem>>, %arg2: memref<9x12x4xf32, #tpu.memory_space<vmem>>, %arg3: memref<12x1xf32, #tpu.memory_space<vmem>>, %arg4: memref<9x256xf32, #tpu.memory_space<vmem>>, %arg5: memref<2x12x256xf32, #tpu.memory_space<vmem>>) attributes {dimension_semantics = [#tpu.dimension_semantics<parallel>], iteration_bounds = array<i64: 1>, scalar_prefetch = 0 : i64, scratch_operands = 0 : i64, tpu.core_type = #tpu.core_type<tc>, window_params = [{transform_indices = @transform_0, window_bounds = array<i64: 2, 4, 256>}, {pipeline_mode = #tpu.pipeline_mode<synchronous>, transform_indices = @transform_1, window_bounds = array<i64: 9, 12, 4>}, {pipeline_mode = #tpu.pipeline_mode<synchronous>, transform_indices = @transform_2, window_bounds = array<i64: 12, 1>}, {pipeline_mode = #tpu.pipeline_mode<synchronous>, transform_indices = @transform_3, window_bounds = array<i64: 9, 256>}, {transform_indices = @transform_4, window_bounds = array<i64: 2, 12, 256>}]} {
    %c0 = arith.constant 0 : index
    %c0_0 = arith.constant 0 : index
    %c0_1 = arith.constant 0 : index
    %0 = vector.load %arg2[%c0, %c0_0, %c0_1] : memref<9x12x4xf32, #tpu.memory_space<vmem>>, vector<9x12x4xf32>
    %c0_2 = arith.constant 0 : index
    %c0_3 = arith.constant 0 : index
    %1 = vector.load %arg4[%c0_2, %c0_3] : memref<9x256xf32, #tpu.memory_space<vmem>>, vector<9x256xf32>
    %c0_4 = arith.constant 0 : index
    %c0_5 = arith.constant 0 : index
    %2 = vector.load %arg3[%c0_4, %c0_5] : memref<12x1xf32, #tpu.memory_space<vmem>>, vector<12x1xf32>
    %c0_6 = arith.constant 0 : index
    %c0_7 = arith.constant 0 : index
    %c0_8 = arith.constant 0 : index
    %3 = vector.load %arg1[%c0_6, %c0_7, %c0_8] : memref<2x4x256xf32, #tpu.memory_space<vmem>>, vector<1x4x256xf32>
    %4 = vector.shape_cast %3 : vector<1x4x256xf32> to vector<4x256xf32>
    %cst = arith.constant 0.000000e+00 : f32
    %5 = vector.broadcast %cst : f32 to vector<12x256xf32>
    %c17_i32 = arith.constant 17 : i32
    %6 = tpu.dynamic_rotate %4 by %c17_i32 dim 1 : vector<4x256xf32>, i32 -> vector<4x256xf32>
    %7 = vector.extract_strided_slice %1 {offsets = [0, 0], sizes = [1, 256], strides = [1, 1]} : vector<9x256xf32> to vector<1x256xf32>
    %8 = vector.broadcast %7 : vector<1x256xf32> to vector<4x256xf32>
    %9 = arith.mulf %6, %8 : vector<4x256xf32>
    %10 = vector.extract_strided_slice %0 {offsets = [0, 0, 0], sizes = [1, 12, 4], strides = [1, 1, 1]} : vector<9x12x4xf32> to vector<1x12x4xf32>
    %11 = vector.shape_cast %10 : vector<1x12x4xf32> to vector<12x4xf32>
    %cst_9 = arith.constant dense<0.000000e+00> : vector<12x256xf32>
    %12 = tpu.matmul %11, %9, %cst_9 {dimension_numbers = #tpu.dot_dimension_numbers<[1], [0], [0], [1], [0, 0, 1, 1], [], []>} : vector<12x4xf32>, vector<4x256xf32>, vector<12x256xf32> -> vector<12x256xf32>
    %13 = arith.addf %5, %12 : vector<12x256xf32>
    %c16_i32 = arith.constant 16 : i32
    %14 = tpu.dynamic_rotate %4 by %c16_i32 dim 1 : vector<4x256xf32>, i32 -> vector<4x256xf32>
    %15 = vector.extract_strided_slice %1 {offsets = [1, 0], sizes = [1, 256], strides = [1, 1]} : vector<9x256xf32> to vector<1x256xf32>
    %16 = vector.broadcast %15 : vector<1x256xf32> to vector<4x256xf32>
    %17 = arith.mulf %14, %16 : vector<4x256xf32>
    %18 = vector.extract_strided_slice %0 {offsets = [1, 0, 0], sizes = [1, 12, 4], strides = [1, 1, 1]} : vector<9x12x4xf32> to vector<1x12x4xf32>
    %19 = vector.shape_cast %18 : vector<1x12x4xf32> to vector<12x4xf32>
    %cst_10 = arith.constant dense<0.000000e+00> : vector<12x256xf32>
    %20 = tpu.matmul %19, %17, %cst_10 {dimension_numbers = #tpu.dot_dimension_numbers<[1], [0], [0], [1], [0, 0, 1, 1], [], []>} : vector<12x4xf32>, vector<4x256xf32>, vector<12x256xf32> -> vector<12x256xf32>
    %21 = arith.addf %13, %20 : vector<12x256xf32>
    %c15_i32 = arith.constant 15 : i32
    %22 = tpu.dynamic_rotate %4 by %c15_i32 dim 1 : vector<4x256xf32>, i32 -> vector<4x256xf32>
    %23 = vector.extract_strided_slice %1 {offsets = [2, 0], sizes = [1, 256], strides = [1, 1]} : vector<9x256xf32> to vector<1x256xf32>
    %24 = vector.broadcast %23 : vector<1x256xf32> to vector<4x256xf32>
    %25 = arith.mulf %22, %24 : vector<4x256xf32>
    %26 = vector.extract_strided_slice %0 {offsets = [2, 0, 0], sizes = [1, 12, 4], strides = [1, 1, 1]} : vector<9x12x4xf32> to vector<1x12x4xf32>
    %27 = vector.shape_cast %26 : vector<1x12x4xf32> to vector<12x4xf32>
    %cst_11 = arith.constant dense<0.000000e+00> : vector<12x256xf32>
    %28 = tpu.matmul %27, %25, %cst_11 {dimension_numbers = #tpu.dot_dimension_numbers<[1], [0], [0], [1], [0, 0, 1, 1], [], []>} : vector<12x4xf32>, vector<4x256xf32>, vector<12x256xf32> -> vector<12x256xf32>
    %29 = arith.addf %21, %28 : vector<12x256xf32>
    %c1_i32 = arith.constant 1 : i32
    %30 = tpu.dynamic_rotate %4 by %c1_i32 dim 1 : vector<4x256xf32>, i32 -> vector<4x256xf32>
    %31 = vector.extract_strided_slice %1 {offsets = [3, 0], sizes = [1, 256], strides = [1, 1]} : vector<9x256xf32> to vector<1x256xf32>
    %32 = vector.broadcast %31 : vector<1x256xf32> to vector<4x256xf32>
    %33 = arith.mulf %30, %32 : vector<4x256xf32>
    %34 = vector.extract_strided_slice %0 {offsets = [3, 0, 0], sizes = [1, 12, 4], strides = [1, 1, 1]} : vector<9x12x4xf32> to vector<1x12x4xf32>
    %35 = vector.shape_cast %34 : vector<1x12x4xf32> to vector<12x4xf32>
    %cst_12 = arith.constant dense<0.000000e+00> : vector<12x256xf32>
    %36 = tpu.matmul %35, %33, %cst_12 {dimension_numbers = #tpu.dot_dimension_numbers<[1], [0], [0], [1], [0, 0, 1, 1], [], []>} : vector<12x4xf32>, vector<4x256xf32>, vector<12x256xf32> -> vector<12x256xf32>
    %37 = arith.addf %29, %36 : vector<12x256xf32>
    %38 = vector.extract_strided_slice %0 {offsets = [4, 0, 0], sizes = [1, 12, 4], strides = [1, 1, 1]} : vector<9x12x4xf32> to vector<1x12x4xf32>
    %39 = vector.shape_cast %38 : vector<1x12x4xf32> to vector<12x4xf32>
    %cst_13 = arith.constant dense<0.000000e+00> : vector<12x256xf32>
    %40 = tpu.matmul %39, %4, %cst_13 {dimension_numbers = #tpu.dot_dimension_numbers<[1], [0], [0], [1], [0, 0, 1, 1], [], []>} : vector<12x4xf32>, vector<4x256xf32>, vector<12x256xf32> -> vector<12x256xf32>
    %41 = arith.addf %37, %40 : vector<12x256xf32>
    %c255_i32 = arith.constant 255 : i32
    %42 = tpu.dynamic_rotate %4 by %c255_i32 dim 1 : vector<4x256xf32>, i32 -> vector<4x256xf32>
    %43 = vector.extract_strided_slice %1 {offsets = [5, 0], sizes = [1, 256], strides = [1, 1]} : vector<9x256xf32> to vector<1x256xf32>
    %44 = vector.broadcast %43 : vector<1x256xf32> to vector<4x256xf32>
    %45 = arith.mulf %42, %44 : vector<4x256xf32>
    %46 = vector.extract_strided_slice %0 {offsets = [5, 0, 0], sizes = [1, 12, 4], strides = [1, 1, 1]} : vector<9x12x4xf32> to vector<1x12x4xf32>
    %47 = vector.shape_cast %46 : vector<1x12x4xf32> to vector<12x4xf32>
    %cst_14 = arith.constant dense<0.000000e+00> : vector<12x256xf32>
    %48 = tpu.matmul %47, %45, %cst_14 {dimension_numbers = #tpu.dot_dimension_numbers<[1], [0], [0], [1], [0, 0, 1, 1], [], []>} : vector<12x4xf32>, vector<4x256xf32>, vector<12x256xf32> -> vector<12x256xf32>
    %49 = arith.addf %41, %48 : vector<12x256xf32>
    %c241_i32 = arith.constant 241 : i32
    %50 = tpu.dynamic_rotate %4 by %c241_i32 dim 1 : vector<4x256xf32>, i32 -> vector<4x256xf32>
    %51 = vector.extract_strided_slice %1 {offsets = [6, 0], sizes = [1, 256], strides = [1, 1]} : vector<9x256xf32> to vector<1x256xf32>
    %52 = vector.broadcast %51 : vector<1x256xf32> to vector<4x256xf32>
    %53 = arith.mulf %50, %52 : vector<4x256xf32>
    %54 = vector.extract_strided_slice %0 {offsets = [6, 0, 0], sizes = [1, 12, 4], strides = [1, 1, 1]} : vector<9x12x4xf32> to vector<1x12x4xf32>
    %55 = vector.shape_cast %54 : vector<1x12x4xf32> to vector<12x4xf32>
    %cst_15 = arith.constant dense<0.000000e+00> : vector<12x256xf32>
    %56 = tpu.matmul %55, %53, %cst_15 {dimension_numbers = #tpu.dot_dimension_numbers<[1], [0], [0], [1], [0, 0, 1, 1], [], []>} : vector<12x4xf32>, vector<4x256xf32>, vector<12x256xf32> -> vector<12x256xf32>
    %57 = arith.addf %49, %56 : vector<12x256xf32>
    %c240_i32 = arith.constant 240 : i32
    %58 = tpu.dynamic_rotate %4 by %c240_i32 dim 1 : vector<4x256xf32>, i32 -> vector<4x256xf32>
    %59 = vector.extract_strided_slice %1 {offsets = [7, 0], sizes = [1, 256], strides = [1, 1]} : vector<9x256xf32> to vector<1x256xf32>
    %60 = vector.broadcast %59 : vector<1x256xf32> to vector<4x256xf32>
    %61 = arith.mulf %58, %60 : vector<4x256xf32>
    %62 = vector.extract_strided_slice %0 {offsets = [7, 0, 0], sizes = [1, 12, 4], strides = [1, 1, 1]} : vector<9x12x4xf32> to vector<1x12x4xf32>
    %63 = vector.shape_cast %62 : vector<1x12x4xf32> to vector<12x4xf32>
    %cst_16 = arith.constant dense<0.000000e+00> : vector<12x256xf32>
    %64 = tpu.matmul %63, %61, %cst_16 {dimension_numbers = #tpu.dot_dimension_numbers<[1], [0], [0], [1], [0, 0, 1, 1], [], []>} : vector<12x4xf32>, vector<4x256xf32>, vector<12x256xf32> -> vector<12x256xf32>
    %65 = arith.addf %57, %64 : vector<12x256xf32>
    %c239_i32 = arith.constant 239 : i32
    %66 = tpu.dynamic_rotate %4 by %c239_i32 dim 1 : vector<4x256xf32>, i32 -> vector<4x256xf32>
    %67 = vector.extract_strided_slice %1 {offsets = [8, 0], sizes = [1, 256], strides = [1, 1]} : vector<9x256xf32> to vector<1x256xf32>
    %68 = vector.broadcast %67 : vector<1x256xf32> to vector<4x256xf32>
    %69 = arith.mulf %66, %68 : vector<4x256xf32>
    %70 = vector.extract_strided_slice %0 {offsets = [8, 0, 0], sizes = [1, 12, 4], strides = [1, 1, 1]} : vector<9x12x4xf32> to vector<1x12x4xf32>
    %71 = vector.shape_cast %70 : vector<1x12x4xf32> to vector<12x4xf32>
    %cst_17 = arith.constant dense<0.000000e+00> : vector<12x256xf32>
    %72 = tpu.matmul %71, %69, %cst_17 {dimension_numbers = #tpu.dot_dimension_numbers<[1], [0], [0], [1], [0, 0, 1, 1], [], []>} : vector<12x4xf32>, vector<4x256xf32>, vector<12x256xf32> -> vector<12x256xf32>
    %73 = arith.addf %65, %72 : vector<12x256xf32>
    %74 = vector.broadcast %2 : vector<12x1xf32> to vector<12x256xf32>
    %75 = arith.addf %73, %74 : vector<12x256xf32>
    %c0_18 = arith.constant 0 : index
    %c0_19 = arith.constant 0 : index
    %c0_20 = arith.constant 0 : index
    %76 = vector.load %arg5[%c0_18, %c0_19, %c0_20] : memref<2x12x256xf32, #tpu.memory_space<vmem>>, vector<1x12x256xf32>
    %77 = vector.shape_cast %76 : vector<1x12x256xf32> to vector<12x256xf32>
    %78 = vector.shape_cast %75 : vector<12x256xf32> to vector<1x12x256xf32>
    tpu.vector_store %arg5[%c0_18, %c0_19, %c0_20], %78 {strides = array<i32>} : memref<2x12x256xf32, #tpu.memory_space<vmem>>, vector<1x12x256xf32>,
    %c1 = arith.constant 1 : index
    %c0_21 = arith.constant 0 : index
    %c0_22 = arith.constant 0 : index
    %79 = vector.load %arg1[%c1, %c0_21, %c0_22] : memref<2x4x256xf32, #tpu.memory_space<vmem>>, vector<1x4x256xf32>
    %80 = vector.shape_cast %79 : vector<1x4x256xf32> to vector<4x256xf32>
    %cst_23 = arith.constant 0.000000e+00 : f32
    %81 = vector.broadcast %cst_23 : f32 to vector<12x256xf32>
    %c17_i32_24 = arith.constant 17 : i32
    %82 = tpu.dynamic_rotate %80 by %c17_i32_24 dim 1 : vector<4x256xf32>, i32 -> vector<4x256xf32>
    %83 = vector.extract_strided_slice %1 {offsets = [0, 0], sizes = [1, 256], strides = [1, 1]} : vector<9x256xf32> to vector<1x256xf32>
    %84 = vector.broadcast %83 : vector<1x256xf32> to vector<4x256xf32>
    %85 = arith.mulf %82, %84 : vector<4x256xf32>
    %86 = vector.extract_strided_slice %0 {offsets = [0, 0, 0], sizes = [1, 12, 4], strides = [1, 1, 1]} : vector<9x12x4xf32> to vector<1x12x4xf32>
    %87 = vector.shape_cast %86 : vector<1x12x4xf32> to vector<12x4xf32>
    %cst_25 = arith.constant dense<0.000000e+00> : vector<12x256xf32>
    %88 = tpu.matmul %87, %85, %cst_25 {dimension_numbers = #tpu.dot_dimension_numbers<[1], [0], [0], [1], [0, 0, 1, 1], [], []>} : vector<12x4xf32>, vector<4x256xf32>, vector<12x256xf32> -> vector<12x256xf32>
    %89 = arith.addf %81, %88 : vector<12x256xf32>
    %c16_i32_26 = arith.constant 16 : i32
    %90 = tpu.dynamic_rotate %80 by %c16_i32_26 dim 1 : vector<4x256xf32>, i32 -> vector<4x256xf32>
    %91 = vector.extract_strided_slice %1 {offsets = [1, 0], sizes = [1, 256], strides = [1, 1]} : vector<9x256xf32> to vector<1x256xf32>
    %92 = vector.broadcast %91 : vector<1x256xf32> to vector<4x256xf32>
    %93 = arith.mulf %90, %92 : vector<4x256xf32>
    %94 = vector.extract_strided_slice %0 {offsets = [1, 0, 0], sizes = [1, 12, 4], strides = [1, 1, 1]} : vector<9x12x4xf32> to vector<1x12x4xf32>
    %95 = vector.shape_cast %94 : vector<1x12x4xf32> to vector<12x4xf32>
    %cst_27 = arith.constant dense<0.000000e+00> : vector<12x256xf32>
    %96 = tpu.matmul %95, %93, %cst_27 {dimension_numbers = #tpu.dot_dimension_numbers<[1], [0], [0], [1], [0, 0, 1, 1], [], []>} : vector<12x4xf32>, vector<4x256xf32>, vector<12x256xf32> -> vector<12x256xf32>
    %97 = arith.addf %89, %96 : vector<12x256xf32>
    %c15_i32_28 = arith.constant 15 : i32
    %98 = tpu.dynamic_rotate %80 by %c15_i32_28 dim 1 : vector<4x256xf32>, i32 -> vector<4x256xf32>
    %99 = vector.extract_strided_slice %1 {offsets = [2, 0], sizes = [1, 256], strides = [1, 1]} : vector<9x256xf32> to vector<1x256xf32>
    %100 = vector.broadcast %99 : vector<1x256xf32> to vector<4x256xf32>
    %101 = arith.mulf %98, %100 : vector<4x256xf32>
    %102 = vector.extract_strided_slice %0 {offsets = [2, 0, 0], sizes = [1, 12, 4], strides = [1, 1, 1]} : vector<9x12x4xf32> to vector<1x12x4xf32>
    %103 = vector.shape_cast %102 : vector<1x12x4xf32> to vector<12x4xf32>
    %cst_29 = arith.constant dense<0.000000e+00> : vector<12x256xf32>
    %104 = tpu.matmul %103, %101, %cst_29 {dimension_numbers = #tpu.dot_dimension_numbers<[1], [0], [0], [1], [0, 0, 1, 1], [], []>} : vector<12x4xf32>, vector<4x256xf32>, vector<12x256xf32> -> vector<12x256xf32>
    %105 = arith.addf %97, %104 : vector<12x256xf32>
    %c1_i32_30 = arith.constant 1 : i32
    %106 = tpu.dynamic_rotate %80 by %c1_i32_30 dim 1 : vector<4x256xf32>, i32 -> vector<4x256xf32>
    %107 = vector.extract_strided_slice %1 {offsets = [3, 0], sizes = [1, 256], strides = [1, 1]} : vector<9x256xf32> to vector<1x256xf32>
    %108 = vector.broadcast %107 : vector<1x256xf32> to vector<4x256xf32>
    %109 = arith.mulf %106, %108 : vector<4x256xf32>
    %110 = vector.extract_strided_slice %0 {offsets = [3, 0, 0], sizes = [1, 12, 4], strides = [1, 1, 1]} : vector<9x12x4xf32> to vector<1x12x4xf32>
    %111 = vector.shape_cast %110 : vector<1x12x4xf32> to vector<12x4xf32>
    %cst_31 = arith.constant dense<0.000000e+00> : vector<12x256xf32>
    %112 = tpu.matmul %111, %109, %cst_31 {dimension_numbers = #tpu.dot_dimension_numbers<[1], [0], [0], [1], [0, 0, 1, 1], [], []>} : vector<12x4xf32>, vector<4x256xf32>, vector<12x256xf32> -> vector<12x256xf32>
    %113 = arith.addf %105, %112 : vector<12x256xf32>
    %114 = vector.extract_strided_slice %0 {offsets = [4, 0, 0], sizes = [1, 12, 4], strides = [1, 1, 1]} : vector<9x12x4xf32> to vector<1x12x4xf32>
    %115 = vector.shape_cast %114 : vector<1x12x4xf32> to vector<12x4xf32>
    %cst_32 = arith.constant dense<0.000000e+00> : vector<12x256xf32>
    %116 = tpu.matmul %115, %80, %cst_32 {dimension_numbers = #tpu.dot_dimension_numbers<[1], [0], [0], [1], [0, 0, 1, 1], [], []>} : vector<12x4xf32>, vector<4x256xf32>, vector<12x256xf32> -> vector<12x256xf32>
    %117 = arith.addf %113, %116 : vector<12x256xf32>
    %c255_i32_33 = arith.constant 255 : i32
    %118 = tpu.dynamic_rotate %80 by %c255_i32_33 dim 1 : vector<4x256xf32>, i32 -> vector<4x256xf32>
    %119 = vector.extract_strided_slice %1 {offsets = [5, 0], sizes = [1, 256], strides = [1, 1]} : vector<9x256xf32> to vector<1x256xf32>
    %120 = vector.broadcast %119 : vector<1x256xf32> to vector<4x256xf32>
    %121 = arith.mulf %118, %120 : vector<4x256xf32>
    %122 = vector.extract_strided_slice %0 {offsets = [5, 0, 0], sizes = [1, 12, 4], strides = [1, 1, 1]} : vector<9x12x4xf32> to vector<1x12x4xf32>
    %123 = vector.shape_cast %122 : vector<1x12x4xf32> to vector<12x4xf32>
    %cst_34 = arith.constant dense<0.000000e+00> : vector<12x256xf32>
    %124 = tpu.matmul %123, %121, %cst_34 {dimension_numbers = #tpu.dot_dimension_numbers<[1], [0], [0], [1], [0, 0, 1, 1], [], []>} : vector<12x4xf32>, vector<4x256xf32>, vector<12x256xf32> -> vector<12x256xf32>
    %125 = arith.addf %117, %124 : vector<12x256xf32>
    %c241_i32_35 = arith.constant 241 : i32
    %126 = tpu.dynamic_rotate %80 by %c241_i32_35 dim 1 : vector<4x256xf32>, i32 -> vector<4x256xf32>
    %127 = vector.extract_strided_slice %1 {offsets = [6, 0], sizes = [1, 256], strides = [1, 1]} : vector<9x256xf32> to vector<1x256xf32>
    %128 = vector.broadcast %127 : vector<1x256xf32> to vector<4x256xf32>
    %129 = arith.mulf %126, %128 : vector<4x256xf32>
    %130 = vector.extract_strided_slice %0 {offsets = [6, 0, 0], sizes = [1, 12, 4], strides = [1, 1, 1]} : vector<9x12x4xf32> to vector<1x12x4xf32>
    %131 = vector.shape_cast %130 : vector<1x12x4xf32> to vector<12x4xf32>
    %cst_36 = arith.constant dense<0.000000e+00> : vector<12x256xf32>
    %132 = tpu.matmul %131, %129, %cst_36 {dimension_numbers = #tpu.dot_dimension_numbers<[1], [0], [0], [1], [0, 0, 1, 1], [], []>} : vector<12x4xf32>, vector<4x256xf32>, vector<12x256xf32> -> vector<12x256xf32>
    %133 = arith.addf %125, %132 : vector<12x256xf32>
    %c240_i32_37 = arith.constant 240 : i32
    %134 = tpu.dynamic_rotate %80 by %c240_i32_37 dim 1 : vector<4x256xf32>, i32 -> vector<4x256xf32>
    %135 = vector.extract_strided_slice %1 {offsets = [7, 0], sizes = [1, 256], strides = [1, 1]} : vector<9x256xf32> to vector<1x256xf32>
    %136 = vector.broadcast %135 : vector<1x256xf32> to vector<4x256xf32>
    %137 = arith.mulf %134, %136 : vector<4x256xf32>
    %138 = vector.extract_strided_slice %0 {offsets = [7, 0, 0], sizes = [1, 12, 4], strides = [1, 1, 1]} : vector<9x12x4xf32> to vector<1x12x4xf32>
    %139 = vector.shape_cast %138 : vector<1x12x4xf32> to vector<12x4xf32>
    %cst_38 = arith.constant dense<0.000000e+00> : vector<12x256xf32>
    %140 = tpu.matmul %139, %137, %cst_38 {dimension_numbers = #tpu.dot_dimension_numbers<[1], [0], [0], [1], [0, 0, 1, 1], [], []>} : vector<12x4xf32>, vector<4x256xf32>, vector<12x256xf32> -> vector<12x256xf32>
    %141 = arith.addf %133, %140 : vector<12x256xf32>
    %c239_i32_39 = arith.constant 239 : i32
    %142 = tpu.dynamic_rotate %80 by %c239_i32_39 dim 1 : vector<4x256xf32>, i32 -> vector<4x256xf32>
    %143 = vector.extract_strided_slice %1 {offsets = [8, 0], sizes = [1, 256], strides = [1, 1]} : vector<9x256xf32> to vector<1x256xf32>
    %144 = vector.broadcast %143 : vector<1x256xf32> to vector<4x256xf32>
    %145 = arith.mulf %142, %144 : vector<4x256xf32>
    %146 = vector.extract_strided_slice %0 {offsets = [8, 0, 0], sizes = [1, 12, 4], strides = [1, 1, 1]} : vector<9x12x4xf32> to vector<1x12x4xf32>
    %147 = vector.shape_cast %146 : vector<1x12x4xf32> to vector<12x4xf32>
    %cst_40 = arith.constant dense<0.000000e+00> : vector<12x256xf32>
    %148 = tpu.matmul %147, %145, %cst_40 {dimension_numbers = #tpu.dot_dimension_numbers<[1], [0], [0], [1], [0, 0, 1, 1], [], []>} : vector<12x4xf32>, vector<4x256xf32>, vector<12x256xf32> -> vector<12x256xf32>
    %149 = arith.addf %141, %148 : vector<12x256xf32>
    %150 = vector.broadcast %2 : vector<12x1xf32> to vector<12x256xf32>
    %151 = arith.addf %149, %150 : vector<12x256xf32>
    %c1_41 = arith.constant 1 : index
    %c0_42 = arith.constant 0 : index
    %c0_43 = arith.constant 0 : index
    %152 = vector.load %arg5[%c1_41, %c0_42, %c0_43] : memref<2x12x256xf32, #tpu.memory_space<vmem>>, vector<1x12x256xf32>
    %153 = vector.shape_cast %152 : vector<1x12x256xf32> to vector<12x256xf32>
    %154 = vector.shape_cast %151 : vector<12x256xf32> to vector<1x12x256xf32>
    tpu.vector_store %arg5[%c1_41, %c0_42, %c0_43], %154 {strides = array<i32>} : memref<2x12x256xf32, #tpu.memory_space<vmem>>, vector<1x12x256xf32>,
    return
  }
  func.func @transform_0(%arg0: i32) -> (i32, i32, i32) {
    %c0_i32 = arith.constant 0 : i32
    %c0_i32_0 = arith.constant 0 : i32
    %c0_i32_1 = arith.constant 0 : i32
    return %arg0, %c0_i32, %c0_i32_0 : i32, i32, i32
  }
  func.func @transform_1(%arg0: i32) -> (i32, i32, i32) {
    %c0_i32 = arith.constant 0 : i32
    %c0_i32_0 = arith.constant 0 : i32
    %c0_i32_1 = arith.constant 0 : i32
    %c0_i32_2 = arith.constant 0 : i32
    return %c0_i32, %c0_i32_0, %c0_i32_1 : i32, i32, i32
  }
  func.func @transform_2(%arg0: i32) -> (i32, i32) {
    %c0_i32 = arith.constant 0 : i32
    %c0_i32_0 = arith.constant 0 : i32
    %c0_i32_1 = arith.constant 0 : i32
    return %c0_i32, %c0_i32_0 : i32, i32
  }
  func.func @transform_3(%arg0: i32) -> (i32, i32) {
    %c0_i32 = arith.constant 0 : i32
    %c0_i32_0 = arith.constant 0 : i32
    %c0_i32_1 = arith.constant 0 : i32
    return %c0_i32, %c0_i32_0 : i32, i32
  }
  func.func @transform_4(%arg0: i32) -> (i32, i32, i32) {
    %c0_i32 = arith.constant 0 : i32
    %c0_i32_0 = arith.constant 0 : i32
    %c0_i32_1 = arith.constant 0 : i32
    return %arg0, %c0_i32, %c0_i32_0 : i32, i32, i32
  }
}

</mosaic_0001>

<llo_original>
// kernel: forward.1
$region0: #{forward.1}
  #allocation0 [shape = 'u32[]', space=smem, size = 0x4, offset = 0x4, fixed_abs, tag = 'smem constant byte address 0x4 - core index']
  #allocation1 [shape = 'u32[144,128]{1,0:T(1,128)}', space=vmem, size = 0x12000, scoped, tag = 'internal scratch']
  %s0 = inlined_call_operand.vmem [shape: f32[2,4,256], index: 0, kind: input, shape index: {}]
  %s1 = inlined_call_operand.vmem [shape: f32[9,12,4], index: 1, kind: input, shape index: {}]
  %s2 = inlined_call_operand.vmem [shape: f32[12,1], index: 2, kind: input, shape index: {}]
  %s3 = inlined_call_operand.vmem [shape: f32[9,256], index: 3, kind: input, shape index: {}]
  %s4 = inlined_call_operand.vmem [shape: f32[2,12,256], index: 4, kind: output, shape index: {}]
  %s5 = sld [smem:[#allocation0]]
  $region26: #{forward.1} parent=0
    _
  %s7 = ssub.s32 1, %s5
  %s8 = scalar_select 0, %s7, %s5
  // Predicated region
  $region2: #{forward.1} parent=0 // pred_check
    _
  $region3: #{forward.1} parent=0 // pred_check_branch
    %10 = sbr.rel (0) target = $region5
  $region4: #{forward.1} parent=0 // pred_region
    _
  $region5: #{forward.1} parent=0 // pred_fallthru
    _
  // Predicated region
  $region6: #{forward.1} parent=0 // pred_check
    _
  $region7: #{forward.1} parent=0 // pred_check_branch
    %12 = sbr.rel (0) target = $region9
  $region8: #{forward.1} parent=0 // pred_region
    _
  $region9: #{forward.1} parent=0 // pred_fallthru
    _
  // Predicated region
  $region10: #{forward.1} parent=0 // pred_check
    _
  $region11: #{forward.1} parent=0 // pred_check_branch
    %14 = sbr.rel (0) target = $region13
  $region12: #{forward.1} parent=0 // pred_region
    _
  $region13: #{forward.1} parent=0 // pred_fallthru
    _
  // Predicated region
  $region14: #{forward.1} parent=0 // pred_check
    _
  $region15: #{forward.1} parent=0 // pred_check_branch
    %16 = sbr.rel (0) target = $region17
  $region16: #{forward.1} parent=0 // pred_region
    _
  $region17: #{forward.1} parent=0 // pred_fallthru
    _
  %v17 = vld [vmem:[%s1] sm:$0xff]
  %v18 = vld [vmem:[%s1 + $0x8] sm:$0xf]
  %v19 = vld [vmem:[%s1 + $0x10] sm:$0xff]
  %v20 = vld [vmem:[%s1 + $0x18] sm:$0xf]
  %v21 = vld [vmem:[%s1 + $0x20] sm:$0xff]
  %v22 = vld [vmem:[%s1 + $0x28] sm:$0xf]
  %v23 = vld [vmem:[%s1 + $0x30] sm:$0xff]
  %v24 = vld [vmem:[%s1 + $0x38] sm:$0xf]
  %v25 = vld [vmem:[%s1 + $0x40] sm:$0xff]
  %v26 = vld [vmem:[%s1 + $0x48] sm:$0xf]
  %v27 = vld [vmem:[%s1 + $0x50] sm:$0xff]
  %v28 = vld [vmem:[%s1 + $0x58] sm:$0xf]
  %v29 = vld [vmem:[%s1 + $0x60] sm:$0xff]
  %v30 = vld [vmem:[%s1 + $0x68] sm:$0xf]
  %v31 = vld [vmem:[%s1 + $0x70] sm:$0xff]
  %v32 = vld [vmem:[%s1 + $0x78] sm:$0xf]
  %v33 = vld [vmem:[%s1 + $0x80] sm:$0xff]
  %v34 = vld [vmem:[%s1 + $0x88] sm:$0xf]
  %v35 = vld [vmem:[%s3] sm:$0xff]
  %v36 = vld [vmem:[%s3 + $0x8] sm:$0xff]
  %v37 = vld [vmem:[%s3 + $0x10] sm:$0x1]
  %v38 = vld [vmem:[%s3 + $0x18] sm:$0x1]
  %v39 = vld [vmem:[%s2] sm:$0xff]
  %v40 = vld [vmem:[%s2 + $0x8] sm:$0xf]
  %v41 = vld [vmem:[%s0] sm:$0xff]
  %v43 = vcombine.high %v41, %v41
  %45 = vrot.lane.b32.xlu0 %v41, 17
  %v46 = vpop.permute.xlu0 %45
  %47 = vrot.lane.b32.xlu0 %v43, 17
  %v48 = vpop.permute.xlu0 %47
  %v49 = vlaneseq
  %v50 = vand.u32 %v49, 127
  %vm51 = vcmp.lt.s32.totalorder %v50, 17
  %v52 = vsel %vm51, %v46, %v48
  %v53 = vsel %vm51, %v48, %v46
  %v54 = vlaneseq
  %v55 = vshrl.u32 %v54, 7
  %v56 = vsub.s32 0, %v55
  %v57 = vrot.slane %v35, %v56
  %v58 = vlaneseq
  %v59 = vshrl.u32 %v58, 7
  %v60 = vsub.s32 0, %v59
  %v61 = vrot.slane %v36, %v60
  %v62 = vmul.f32 %v53, %v57
  %v63 = vmul.f32 %v52, %v61
  %64 = vrot.lane.b32.xlu0 %v41, 16
  %v65 = vpop.permute.xlu0 %64
  %66 = vrot.lane.b32.xlu0 %v43, 16
  %v67 = vpop.permute.xlu0 %66
  %vm68 = vcmp.lt.s32.totalorder %v50, 16
  %v69 = vsel %vm68, %v65, %v67
  %v70 = vsel %vm68, %v67, %v65
  %v71 = vlaneseq
  %v72 = vshrl.u32 %v71, 7
  %v73 = vsub.s32 1, %v72
  %v74 = vrot.slane %v35, %v73
  %v75 = vlaneseq
  %v76 = vshrl.u32 %v75, 7
  %v77 = vsub.s32 1, %v76
  %v78 = vrot.slane %v36, %v77
  %v79 = vmul.f32 %v70, %v74
  %v80 = vmul.f32 %v69, %v78
  %vm81 = vcmask 31744
  %v83 = vsel %vm81, %v19, 0
  %v86 = vsel %vm81, %v20, 0
  %vm88 = vcmask 1043456
  %v90 = vsel %vm88, %v79, 0
  %v93 = vsel %vm88, %v80, 0
  %95 = vmatprep.subr.mxu0 0.0
  %96 = vmatpush1.msra.mxu0 0.0
  %97 = vmatprep.subr.mxu0 0.0
  %98 = vmatpush1.msra.mxu0 0.0
  %99 = vmatprep.subr.mxu0 0.0
  %100 = vmatpush1.msra.mxu0 0.0
  %101 = vmatprep.subr.mxu0 0.0
  %102 = vmatpush1.msra.mxu0 0.0
  %103 = vmatprep.subr.mxu0 0.0
  %104 = vmatpush1.msra.mxu0 0.0
  %105 = vmatprep.subr.mxu0 0.0
  %106 = vmatpush1.msra.mxu0 0.0
  %107 = vmatprep.subr.mxu0 0.0
  %108 = vmatpush1.msra.mxu0 0.0
  %109 = vmatprep.subr.mxu0 0.0
  %110 = vmatpush1.msra.mxu0 0.0
  %111 = vmatprep.subr.mxu0 0.0
  %112 = vmatpush1.msra.mxu0 0.0
  %113 = vmatprep.subr.mxu0 0.0
  %114 = vmatpush1.msra.mxu0 0.0
  %115 = vmatprep.subr.mxu0 0.0
  %116 = vmatpush1.msra.mxu0 0.0
  %117 = vmatprep.subr.mxu0 0.0
  %118 = vmatpush1.msra.mxu0 0.0
  %119 = vmatprep.subr.mxu0 0.0
  %120 = vmatpush1.msra.mxu0 0.0
  %121 = vmatprep.subr.mxu0 0.0
  %122 = vmatpush1.msra.mxu0 0.0
  %123 = vmatprep.subr.mxu0 0.0
  %124 = vmatpush1.msra.mxu0 0.0
  %125 = vmatprep.subr.mxu0 %v93
  %126 = vmatpush1.msra.mxu0 %v90
  %127 = vmatprep.subr.mxu0 0.0
  %128 = vmatpush2.msra.mxu0 0.0
  %129 = vmatprep.subr.mxu0 0.0
  %130 = vmatpush2.msra.mxu0 0.0
  %131 = vmatprep.subr.mxu0 0.0
  %132 = vmatpush2.msra.mxu0 0.0
  %133 = vmatprep.subr.mxu0 0.0
  %134 = vmatpush2.msra.mxu0 0.0
  %135 = vmatprep.subr.mxu0 0.0
  %136 = vmatpush2.msra.mxu0 0.0
  %137 = vmatprep.subr.mxu0 0.0
  %138 = vmatpush2.msra.mxu0 0.0
  %139 = vmatprep.subr.mxu0 0.0
  %140 = vmatpush2.msra.mxu0 0.0
  %141 = vmatprep.subr.mxu0 0.0
  %142 = vmatpush2.msra.mxu0 0.0
  %143 = vmatprep.subr.mxu0 0.0
  %144 = vmatpush2.msra.mxu0 0.0
  %145 = vmatprep.subr.mxu0 0.0
  %146 = vmatpush2.msra.mxu0 0.0
  %147 = vmatprep.subr.mxu0 0.0
  %148 = vmatpush2.msra.mxu0 0.0
  %149 = vmatprep.subr.mxu0 0.0
  %150 = vmatpush2.msra.mxu0 0.0
  %151 = vmatprep.subr.mxu0 0.0
  %152 = vmatpush2.msra.mxu0 0.0
  %153 = vmatprep.subr.mxu0 0.0
  %154 = vmatpush2.msra.mxu0 0.0
  %155 = vmatprep.subr.mxu0 0.0
  %156 = vmatpush2.msra.mxu0 0.0
  %157 = vmatprep.subr.mxu0 0.0
  %158 = vmatpush2.msra.mxu0 0.0
  %159 = vmatprep.mubr.f32.mxu0 0.0
  %160 = vmatmul.mubr.f32.gmra.mxu0 %v83
  %v161 = vpop.f32.mrf.mxu0
  %v162 = vadd.f32 0.0, %v161
  %v163 = vpop.f32.mrf.mxu0
  %v164 = vadd.f32 0.0, %v163
  %165 = vmatprep.mubr.f32.mxu0 0.0
  %166 = vmatmul.mubr.f32.gmra.mxu0 %v86
  %v167 = vpop.f32.mrf.mxu0
  %v168 = vadd.f32 0.0, %v167
  %v169 = vpop.f32.mrf.mxu0
  %v170 = vadd.f32 0.0, %v169
  %171 = vdwg.mxu0
  %v173 = vsel %vm81, %v17, 0
  %v176 = vsel %vm81, %v18, 0
  %v179 = vsel %vm88, %v62, 0
  %v182 = vsel %vm88, %v63, 0
  %184 = vmatprep.subr.mxu0 0.0
  %185 = vmatpush1.msra.mxu0 0.0
  %186 = vmatprep.subr.mxu0 0.0
  %187 = vmatpush1.msra.mxu0 0.0
  %188 = vmatprep.subr.mxu0 0.0
  %189 = vmatpush1.msra.mxu0 0.0
  %190 = vmatprep.subr.mxu0 0.0
  %191 = vmatpush1.msra.mxu0 0.0
  %192 = vmatprep.subr.mxu0 0.0
  %193 = vmatpush1.msra.mxu0 0.0
  %194 = vmatprep.subr.mxu0 0.0
  %195 = vmatpush1.msra.mxu0 0.0
  %196 = vmatprep.subr.mxu0 0.0
  %197 = vmatpush1.msra.mxu0 0.0
  %198 = vmatprep.subr.mxu0 0.0
  %199 = vmatpush1.msra.mxu0 0.0
  %200 = vmatprep.subr.mxu0 0.0
  %201 = vmatpush1.msra.mxu0 0.0
  %202 = vmatprep.subr.mxu0 0.0
  %203 = vmatpush1.msra.mxu0 0.0
  %204 = vmatprep.subr.mxu0 0.0
  %205 = vmatpush1.msra.mxu0 0.0
  %206 = vmatprep.subr.mxu0 0.0
  %207 = vmatpush1.msra.mxu0 0.0
  %208 = vmatprep.subr.mxu0 0.0
  %209 = vmatpush1.msra.mxu0 0.0
  %210 = vmatprep.subr.mxu0 0.0
  %211 = vmatpush1.msra.mxu0 0.0
  %212 = vmatprep.subr.mxu0 0.0
  %213 = vmatpush1.msra.mxu0 0.0
  %214 = vmatprep.subr.mxu0 %v182
  %215 = vmatpush1.msra.mxu0 %v179
  %216 = vmatprep.subr.mxu0 0.0
  %217 = vmatpush2.msra.mxu0 0.0
  %218 = vmatprep.subr.mxu0 0.0
  %219 = vmatpush2.msra.mxu0 0.0
  %220 = vmatprep.subr.mxu0 0.0
  %221 = vmatpush2.msra.mxu0 0.0
  %222 = vmatprep.subr.mxu0 0.0
  %223 = vmatpush2.msra.mxu0 0.0
  %224 = vmatprep.subr.mxu0 0.0
  %225 = vmatpush2.msra.mxu0 0.0
  %226 = vmatprep.subr.mxu0 0.0
  %227 = vmatpush2.msra.mxu0 0.0
  %228 = vmatprep.subr.mxu0 0.0
  %229 = vmatpush2.msra.mxu0 0.0
  %230 = vmatprep.subr.mxu0 0.0
  %231 = vmatpush2.msra.mxu0 0.0
  %232 = vmatprep.subr.mxu0 0.0
  %233 = vmatpush2.msra.mxu0 0.0
  %234 = vmatprep.subr.mxu0 0.0
  %235 = vmatpush2.msra.mxu0 0.0
  %236 = vmatprep.subr.mxu0 0.0
  %237 = vmatpush2.msra.mxu0 0.0
  %238 = vmatprep.subr.mxu0 0.0
  %239 = vmatpush2.msra.mxu0 0.0
  %240 = vmatprep.subr.mxu0 0.0
  %241 = vmatpush2.msra.mxu0 0.0
  %242 = vmatprep.subr.mxu0 0.0
  %243 = vmatpush2.msra.mxu0 0.0
  %244 = vmatprep.subr.mxu0 0.0
  %245 = vmatpush2.msra.mxu0 0.0
  %246 = vmatprep.subr.mxu0 0.0
  %247 = vmatpush2.msra.mxu0 0.0
  %248 = vmatprep.mubr.f32.mxu0 0.0
  %249 = vmatmul.mubr.f32.gmra.mxu0 %v173
  %v250 = vpop.f32.mrf.mxu0
  %v251 = vadd.f32 %v162, %v250
  %v252 = vpop.f32.mrf.mxu0
  %v253 = vadd.f32 %v164, %v252
  %254 = vmatprep.mubr.f32.mxu0 0.0
  %255 = vmatmul.mubr.f32.gmra.mxu0 %v176
  %v256 = vpop.f32.mrf.mxu0
  %v257 = vadd.f32 %v168, %v256
  %v258 = vpop.f32.mrf.mxu0
  %v259 = vadd.f32 %v170, %v258
  %260 = vdwg.mxu0
  %261 = vrot.lane.b32.xlu0 %v41, 15
  %v262 = vpop.permute.xlu0 %261
  %263 = vrot.lane.b32.xlu0 %v43, 15
  %v264 = vpop.permute.xlu0 %263
  %vm265 = vcmp.lt.s32.totalorder %v50, 15
  %v266 = vsel %vm265, %v262, %v264
  %v267 = vsel %vm265, %v264, %v262
  %v268 = vlaneseq
  %v269 = vshrl.u32 %v268, 7
  %v270 = vsub.s32 2, %v269
  %v271 = vrot.slane %v35, %v270
  %v272 = vlaneseq
  %v273 = vshrl.u32 %v272, 7
  %v274 = vsub.s32 2, %v273
  %v275 = vrot.slane %v36, %v274
  %v276 = vmul.f32 %v267, %v271
  %v277 = vmul.f32 %v266, %v275
  %v279 = vsel %vm81, %v21, 0
  %v282 = vsel %vm81, %v22, 0
  %v285 = vsel %vm88, %v276, 0
  %v288 = vsel %vm88, %v277, 0
  %290 = vmatprep.subr.mxu0 0.0
  %291 = vmatpush1.msra.mxu0 0.0
  %292 = vmatprep.subr.mxu0 0.0
  %293 = vmatpush1.msra.mxu0 0.0
  %294 = vmatprep.subr.mxu0 0.0
  %295 = vmatpush1.msra.mxu0 0.0
  %296 = vmatprep.subr.mxu0 0.0
  %297 = vmatpush1.msra.mxu0 0.0
  %298 = vmatprep.subr.mxu0 0.0
  %299 = vmatpush1.msra.mxu0 0.0
  %300 = vmatprep.subr.mxu0 0.0
  %301 = vmatpush1.msra.mxu0 0.0
  %302 = vmatprep.subr.mxu0 0.0
  %303 = vmatpush1.msra.mxu0 0.0
  %304 = vmatprep.subr.mxu0 0.0
  %305 = vmatpush1.msra.mxu0 0.0
  %306 = vmatprep.subr.mxu0 0.0
  %307 = vmatpush1.msra.mxu0 0.0
  %308 = vmatprep.subr.mxu0 0.0
  %309 = vmatpush1.msra.mxu0 0.0
  %310 = vmatprep.subr.mxu0 0.0
  %311 = vmatpush1.msra.mxu0 0.0
  %312 = vmatprep.subr.mxu0 0.0
  %313 = vmatpush1.msra.mxu0 0.0
  %314 = vmatprep.subr.mxu0 0.0
  %315 = vmatpush1.msra.mxu0 0.0
  %316 = vmatprep.subr.mxu0 0.0
  %317 = vmatpush1.msra.mxu0 0.0
  %318 = vmatprep.subr.mxu0 0.0
  %319 = vmatpush1.msra.mxu0 0.0
  %320 = vmatprep.subr.mxu0 %v288
  %321 = vmatpush1.msra.mxu0 %v285
  %322 = vmatprep.subr.mxu0 0.0
  %323 = vmatpush2.msra.mxu0 0.0
  %324 = vmatprep.subr.mxu0 0.0
  %325 = vmatpush2.msra.mxu0 0.0
  %326 = vmatprep.subr.mxu0 0.0
  %327 = vmatpush2.msra.mxu0 0.0
  %328 = vmatprep.subr.mxu0 0.0
  %329 = vmatpush2.msra.mxu0 0.0
  %330 = vmatprep.subr.mxu0 0.0
  %331 = vmatpush2.msra.mxu0 0.0
  %332 = vmatprep.subr.mxu0 0.0
  %333 = vmatpush2.msra.mxu0 0.0
  %334 = vmatprep.subr.mxu0 0.0
  %335 = vmatpush2.msra.mxu0 0.0
  %336 = vmatprep.subr.mxu0 0.0
  %337 = vmatpush2.msra.mxu0 0.0
  %338 = vmatprep.subr.mxu0 0.0
  %339 = vmatpush2.msra.mxu0 0.0
  %340 = vmatprep.subr.mxu0 0.0
  %341 = vmatpush2.msra.mxu0 0.0
  %342 = vmatprep.subr.mxu0 0.0
  %343 = vmatpush2.msra.mxu0 0.0
  %344 = vmatprep.subr.mxu0 0.0
  %345 = vmatpush2.msra.mxu0 0.0
  %346 = vmatprep.subr.mxu0 0.0
  %347 = vmatpush2.msra.mxu0 0.0
  %348 = vmatprep.subr.mxu0 0.0
  %349 = vmatpush2.msra.mxu0 0.0
  %350 = vmatprep.subr.mxu0 0.0
  %351 = vmatpush2.msra.mxu0 0.0
  %352 = vmatprep.subr.mxu0 0.0
  %353 = vmatpush2.msra.mxu0 0.0
  %354 = vmatprep.mubr.f32.mxu0 0.0
  %355 = vmatmul.mubr.f32.gmra.mxu0 %v279
  %v356 = vpop.f32.mrf.mxu0
  %v357 = vadd.f32 0.0, %v356
  %v358 = vpop.f32.mrf.mxu0
  %v359 = vadd.f32 0.0, %v358
  %360 = vmatprep.mubr.f32.mxu0 0.0
  %361 = vmatmul.mubr.f32.gmra.mxu0 %v282
  %v362 = vpop.f32.mrf.mxu0
  %v363 = vadd.f32 0.0, %v362
  %v364 = vpop.f32.mrf.mxu0
  %v365 = vadd.f32 0.0, %v364
  %366 = vdwg.mxu0
  %v367 = vadd.f32 %v251, %v357
  %v368 = vadd.f32 %v253, %v359
  %v369 = vadd.f32 %v257, %v363
  %v370 = vadd.f32 %v259, %v365
  %371 = vrot.lane.b32.xlu0 %v41, 1
  %v372 = vpop.permute.xlu0 %371
  %373 = vrot.lane.b32.xlu0 %v43, 1
  %v374 = vpop.permute.xlu0 %373
  %vm375 = vcmp.lt.s32.totalorder %v50, 1
  %v376 = vsel %vm375, %v372, %v374
  %v377 = vsel %vm375, %v374, %v372
  %v378 = vlaneseq
  %v379 = vshrl.u32 %v378, 7
  %v380 = vsub.s32 3, %v379
  %v381 = vrot.slane %v35, %v380
  %v382 = vlaneseq
  %v383 = vshrl.u32 %v382, 7
  %v384 = vsub.s32 3, %v383
  %v385 = vrot.slane %v36, %v384
  %v386 = vmul.f32 %v377, %v381
  %v387 = vmul.f32 %v376, %v385
  %v389 = vsel %vm81, %v23, 0
  %v392 = vsel %vm81, %v24, 0
  %v395 = vsel %vm88, %v386, 0
  %v398 = vsel %vm88, %v387, 0
  %400 = vmatprep.subr.mxu0 0.0
  %401 = vmatpush1.msra.mxu0 0.0
  %402 = vmatprep.subr.mxu0 0.0
  %403 = vmatpush1.msra.mxu0 0.0
  %404 = vmatprep.subr.mxu0 0.0
  %405 = vmatpush1.msra.mxu0 0.0
  %406 = vmatprep.subr.mxu0 0.0
  %407 = vmatpush1.msra.mxu0 0.0
  %408 = vmatprep.subr.mxu0 0.0
  %409 = vmatpush1.msra.mxu0 0.0
  %410 = vmatprep.subr.mxu0 0.0
  %411 = vmatpush1.msra.mxu0 0.0
  %412 = vmatprep.subr.mxu0 0.0
  %413 = vmatpush1.msra.mxu0 0.0
  %414 = vmatprep.subr.mxu0 0.0
  %415 = vmatpush1.msra.mxu0 0.0
  %416 = vmatprep.subr.mxu0 0.0
  %417 = vmatpush1.msra.mxu0 0.0
  %418 = vmatprep.subr.mxu0 0.0
  %419 = vmatpush1.msra.mxu0 0.0
  %420 = vmatprep.subr.mxu0 0.0
  %421 = vmatpush1.msra.mxu0 0.0
  %422 = vmatprep.subr.mxu0 0.0
  %423 = vmatpush1.msra.mxu0 0.0
  %424 = vmatprep.subr.mxu0 0.0
  %425 = vmatpush1.msra.mxu0 0.0
  %426 = vmatprep.subr.mxu0 0.0
  %427 = vmatpush1.msra.mxu0 0.0
  %428 = vmatprep.subr.mxu0 0.0
  %429 = vmatpush1.msra.mxu0 0.0
  %430 = vmatprep.subr.mxu0 %v398
  %431 = vmatpush1.msra.mxu0 %v395
  %432 = vmatprep.subr.mxu0 0.0
  %433 = vmatpush2.msra.mxu0 0.0
  %434 = vmatprep.subr.mxu0 0.0
  %435 = vmatpush2.msra.mxu0 0.0
  %436 = vmatprep.subr.mxu0 0.0
  %437 = vmatpush2.msra.mxu0 0.0
  %438 = vmatprep.subr.mxu0 0.0
  %439 = vmatpush2.msra.mxu0 0.0
  %440 = vmatprep.subr.mxu0 0.0
  %441 = vmatpush2.msra.mxu0 0.0
  %442 = vmatprep.subr.mxu0 0.0
  %443 = vmatpush2.msra.mxu0 0.0
  %444 = vmatprep.subr.mxu0 0.0
  %445 = vmatpush2.msra.mxu0 0.0
  %446 = vmatprep.subr.mxu0 0.0
  %447 = vmatpush2.msra.mxu0 0.0
  %448 = vmatprep.subr.mxu0 0.0
  %449 = vmatpush2.msra.mxu0 0.0
  %450 = vmatprep.subr.mxu0 0.0
  %451 = vmatpush2.msra.mxu0 0.0
  %452 = vmatprep.subr.mxu0 0.0
  %453 = vmatpush2.msra.mxu0 0.0
  %454 = vmatprep.subr.mxu0 0.0
  %455 = vmatpush2.msra.mxu0 0.0
  %456 = vmatprep.subr.mxu0 0.0
  %457 = vmatpush2.msra.mxu0 0.0
  %458 = vmatprep.subr.mxu0 0.0
  %459 = vmatpush2.msra.mxu0 0.0
  %460 = vmatprep.subr.mxu0 0.0
  %461 = vmatpush2.msra.mxu0 0.0
  %462 = vmatprep.subr.mxu0 0.0
  %463 = vmatpush2.msra.mxu0 0.0
  %464 = vmatprep.mubr.f32.mxu0 0.0
  %465 = vmatmul.mubr.f32.gmra.mxu0 %v389
  %v466 = vpop.f32.mrf.mxu0
  %v467 = vadd.f32 0.0, %v466
  %v468 = vpop.f32.mrf.mxu0
  %v469 = vadd.f32 0.0, %v468
  %470 = vmatprep.mubr.f32.mxu0 0.0
  %471 = vmatmul.mubr.f32.gmra.mxu0 %v392
  %v472 = vpop.f32.mrf.mxu0
  %v473 = vadd.f32 0.0, %v472
  %v474 = vpop.f32.mrf.mxu0
  %v475 = vadd.f32 0.0, %v474
  %476 = vdwg.mxu0
  %v477 = vadd.f32 %v367, %v467
  %v478 = vadd.f32 %v368, %v469
  %v479 = vadd.f32 %v369, %v473
  %v480 = vadd.f32 %v370, %v475
  %v482 = vsel %vm81, %v25, 0
  %v485 = vsel %vm81, %v26, 0
  %v487 = vsel %vm88, %v41, 0
  %v489 = vsel %vm88, %v43, 0
  %491 = vmatprep.subr.mxu0 0.0
  %492 = vmatpush1.msra.mxu0 0.0
  %493 = vmatprep.subr.mxu0 0.0
  %494 = vmatpush1.msra.mxu0 0.0
  %495 = vmatprep.subr.mxu0 0.0
  %496 = vmatpush1.msra.mxu0 0.0
  %497 = vmatprep.subr.mxu0 0.0
  %498 = vmatpush1.msra.mxu0 0.0
  %499 = vmatprep.subr.mxu0 0.0
  %500 = vmatpush1.msra.mxu0 0.0
  %501 = vmatprep.subr.mxu0 0.0
  %502 = vmatpush1.msra.mxu0 0.0
  %503 = vmatprep.subr.mxu0 0.0
  %504 = vmatpush1.msra.mxu0 0.0
  %505 = vmatprep.subr.mxu0 0.0
  %506 = vmatpush1.msra.mxu0 0.0
  %507 = vmatprep.subr.mxu0 0.0
  %508 = vmatpush1.msra.mxu0 0.0
  %509 = vmatprep.subr.mxu0 0.0
  %510 = vmatpush1.msra.mxu0 0.0
  %511 = vmatprep.subr.mxu0 0.0
  %512 = vmatpush1.msra.mxu0 0.0
  %513 = vmatprep.subr.mxu0 0.0
  %514 = vmatpush1.msra.mxu0 0.0
  %515 = vmatprep.subr.mxu0 0.0
  %516 = vmatpush1.msra.mxu0 0.0
  %517 = vmatprep.subr.mxu0 0.0
  %518 = vmatpush1.msra.mxu0 0.0
  %519 = vmatprep.subr.mxu0 0.0
  %520 = vmatpush1.msra.mxu0 0.0
  %521 = vmatprep.subr.mxu0 %v489
  %522 = vmatpush1.msra.mxu0 %v487
  %523 = vmatprep.subr.mxu0 0.0
  %524 = vmatpush2.msra.mxu0 0.0
  %525 = vmatprep.subr.mxu0 0.0
  %526 = vmatpush2.msra.mxu0 0.0
  %527 = vmatprep.subr.mxu0 0.0
  %528 = vmatpush2.msra.mxu0 0.0
  %529 = vmatprep.subr.mxu0 0.0
  %530 = vmatpush2.msra.mxu0 0.0
  %531 = vmatprep.subr.mxu0 0.0
  %532 = vmatpush2.msra.mxu0 0.0
  %533 = vmatprep.subr.mxu0 0.0
  %534 = vmatpush2.msra.mxu0 0.0
  %535 = vmatprep.subr.mxu0 0.0
  %536 = vmatpush2.msra.mxu0 0.0
  %537 = vmatprep.subr.mxu0 0.0
  %538 = vmatpush2.msra.mxu0 0.0
  %539 = vmatprep.subr.mxu0 0.0
  %540 = vmatpush2.msra.mxu0 0.0
  %541 = vmatprep.subr.mxu0 0.0
  %542 = vmatpush2.msra.mxu0 0.0
  %543 = vmatprep.subr.mxu0 0.0
  %544 = vmatpush2.msra.mxu0 0.0
  %545 = vmatprep.subr.mxu0 0.0
  %546 = vmatpush2.msra.mxu0 0.0
  %547 = vmatprep.subr.mxu0 0.0
  %548 = vmatpush2.msra.mxu0 0.0
  %549 = vmatprep.subr.mxu0 0.0
  %550 = vmatpush2.msra.mxu0 0.0
  %551 = vmatprep.subr.mxu0 0.0
  %552 = vmatpush2.msra.mxu0 0.0
  %553 = vmatprep.subr.mxu0 0.0
  %554 = vmatpush2.msra.mxu0 0.0
  %555 = vmatprep.mubr.f32.mxu0 0.0
  %556 = vmatmul.mubr.f32.gmra.mxu0 %v482
  %v557 = vpop.f32.mrf.mxu0
  %v558 = vadd.f32 0.0, %v557
  %v559 = vpop.f32.mrf.mxu0
  %v560 = vadd.f32 0.0, %v559
  %561 = vmatprep.mubr.f32.mxu0 0.0
  %562 = vmatmul.mubr.f32.gmra.mxu0 %v485
  %v563 = vpop.f32.mrf.mxu0
  %v564 = vadd.f32 0.0, %v563
  %v565 = vpop.f32.mrf.mxu0
  %v566 = vadd.f32 0.0, %v565
  %567 = vdwg.mxu0
  %v568 = vadd.f32 %v477, %v558
  %v569 = vadd.f32 %v478, %v560
  %v570 = vadd.f32 %v479, %v564
  %v571 = vadd.f32 %v480, %v566
  %572 = vrot.lane.b32.xlu0 %v41, 127
  %v573 = vpop.permute.xlu0 %572
  %574 = vrot.lane.b32.xlu0 %v43, 127
  %v575 = vpop.permute.xlu0 %574
  %vm576 = vcmp.lt.s32.totalorder %v50, 127
  %v577 = vsel %vm576, %v573, %v575
  %v578 = vsel %vm576, %v575, %v573
  %v579 = vlaneseq
  %v580 = vshrl.u32 %v579, 7
  %v581 = vsub.s32 5, %v580
  %v582 = vrot.slane %v35, %v581
  %v583 = vlaneseq
  %v584 = vshrl.u32 %v583, 7
  %v585 = vsub.s32 5, %v584
  %v586 = vrot.slane %v36, %v585
  %v587 = vmul.f32 %v577, %v582
  %v588 = vmul.f32 %v578, %v586
  %v590 = vsel %vm81, %v27, 0
  %v593 = vsel %vm81, %v28, 0
  %v596 = vsel %vm88, %v587, 0
  %v599 = vsel %vm88, %v588, 0
  %601 = vmatprep.subr.mxu0 0.0
  %602 = vmatpush1.msra.mxu0 0.0
  %603 = vmatprep.subr.mxu0 0.0
  %604 = vmatpush1.msra.mxu0 0.0
  %605 = vmatprep.subr.mxu0 0.0
  %606 = vmatpush1.msra.mxu0 0.0
  %607 = vmatprep.subr.mxu0 0.0
  %608 = vmatpush1.msra.mxu0 0.0
  %609 = vmatprep.subr.mxu0 0.0
  %610 = vmatpush1.msra.mxu0 0.0
  %611 = vmatprep.subr.mxu0 0.0
  %612 = vmatpush1.msra.mxu0 0.0
  %613 = vmatprep.subr.mxu0 0.0
  %614 = vmatpush1.msra.mxu0 0.0
  %615 = vmatprep.subr.mxu0 0.0
  %616 = vmatpush1.msra.mxu0 0.0
  %617 = vmatprep.subr.mxu0 0.0
  %618 = vmatpush1.msra.mxu0 0.0
  %619 = vmatprep.subr.mxu0 0.0
  %620 = vmatpush1.msra.mxu0 0.0
  %621 = vmatprep.subr.mxu0 0.0
  %622 = vmatpush1.msra.mxu0 0.0
  %623 = vmatprep.subr.mxu0 0.0
  %624 = vmatpush1.msra.mxu0 0.0
  %625 = vmatprep.subr.mxu0 0.0
  %626 = vmatpush1.msra.mxu0 0.0
  %627 = vmatprep.subr.mxu0 0.0
  %628 = vmatpush1.msra.mxu0 0.0
  %629 = vmatprep.subr.mxu0 0.0
  %630 = vmatpush1.msra.mxu0 0.0
  %631 = vmatprep.subr.mxu0 %v599
  %632 = vmatpush1.msra.mxu0 %v596
  %633 = vmatprep.subr.mxu0 0.0
  %634 = vmatpush2.msra.mxu0 0.0
  %635 = vmatprep.subr.mxu0 0.0
  %636 = vmatpush2.msra.mxu0 0.0
  %637 = vmatprep.subr.mxu0 0.0
  %638 = vmatpush2.msra.mxu0 0.0
  %639 = vmatprep.subr.mxu0 0.0
  %640 = vmatpush2.msra.mxu0 0.0
  %641 = vmatprep.subr.mxu0 0.0
  %642 = vmatpush2.msra.mxu0 0.0
  %643 = vmatprep.subr.mxu0 0.0
  %644 = vmatpush2.msra.mxu0 0.0
  %645 = vmatprep.subr.mxu0 0.0
  %646 = vmatpush2.msra.mxu0 0.0
  %647 = vmatprep.subr.mxu0 0.0
  %648 = vmatpush2.msra.mxu0 0.0
  %649 = vmatprep.subr.mxu0 0.0
  %650 = vmatpush2.msra.mxu0 0.0
  %651 = vmatprep.subr.mxu0 0.0
  %652 = vmatpush2.msra.mxu0 0.0
  %653 = vmatprep.subr.mxu0 0.0
  %654 = vmatpush2.msra.mxu0 0.0
  %655 = vmatprep.subr.mxu0 0.0
  %656 = vmatpush2.msra.mxu0 0.0
  %657 = vmatprep.subr.mxu0 0.0
  %658 = vmatpush2.msra.mxu0 0.0
  %659 = vmatprep.subr.mxu0 0.0
  %660 = vmatpush2.msra.mxu0 0.0
  %661 = vmatprep.subr.mxu0 0.0
  %662 = vmatpush2.msra.mxu0 0.0
  %663 = vmatprep.subr.mxu0 0.0
  %664 = vmatpush2.msra.mxu0 0.0
  %665 = vmatprep.mubr.f32.mxu0 0.0
  %666 = vmatmul.mubr.f32.gmra.mxu0 %v590
  %v667 = vpop.f32.mrf.mxu0
  %v668 = vadd.f32 0.0, %v667
  %v669 = vpop.f32.mrf.mxu0
  %v670 = vadd.f32 0.0, %v669
  %671 = vmatprep.mubr.f32.mxu0 0.0
  %672 = vmatmul.mubr.f32.gmra.mxu0 %v593
  %v673 = vpop.f32.mrf.mxu0
  %v674 = vadd.f32 0.0, %v673
  %v675 = vpop.f32.mrf.mxu0
  %v676 = vadd.f32 0.0, %v675
  %677 = vdwg.mxu0
  %v678 = vadd.f32 %v568, %v668
  %v679 = vadd.f32 %v569, %v670
  %v680 = vadd.f32 %v570, %v674
  %v681 = vadd.f32 %v571, %v676
  %682 = vrot.lane.b32.xlu0 %v41, 113
  %v683 = vpop.permute.xlu0 %682
  %684 = vrot.lane.b32.xlu0 %v43, 113
  %v685 = vpop.permute.xlu0 %684
  %vm686 = vcmp.lt.s32.totalorder %v50, 113
  %v687 = vsel %vm686, %v683, %v685
  %v688 = vsel %vm686, %v685, %v683
  %v689 = vlaneseq
  %v690 = vshrl.u32 %v689, 7
  %v691 = vsub.s32 6, %v690
  %v692 = vrot.slane %v35, %v691
  %v693 = vlaneseq
  %v694 = vshrl.u32 %v693, 7
  %v695 = vsub.s32 6, %v694
  %v696 = vrot.slane %v36, %v695
  %v697 = vmul.f32 %v687, %v692
  %v698 = vmul.f32 %v688, %v696
  %v700 = vsel %vm81, %v29, 0
  %v703 = vsel %vm81, %v30, 0
  %v706 = vsel %vm88, %v697, 0
  %v709 = vsel %vm88, %v698, 0
  %711 = vmatprep.subr.mxu0 0.0
  %712 = vmatpush1.msra.mxu0 0.0
  %713 = vmatprep.subr.mxu0 0.0
  %714 = vmatpush1.msra.mxu0 0.0
  %715 = vmatprep.subr.mxu0 0.0
  %716 = vmatpush1.msra.mxu0 0.0
  %717 = vmatprep.subr.mxu0 0.0
  %718 = vmatpush1.msra.mxu0 0.0
  %719 = vmatprep.subr.mxu0 0.0
  %720 = vmatpush1.msra.mxu0 0.0
  %721 = vmatprep.subr.mxu0 0.0
  %722 = vmatpush1.msra.mxu0 0.0
  %723 = vmatprep.subr.mxu0 0.0
  %724 = vmatpush1.msra.mxu0 0.0
  %725 = vmatprep.subr.mxu0 0.0
  %726 = vmatpush1.msra.mxu0 0.0
  %727 = vmatprep.subr.mxu0 0.0
  %728 = vmatpush1.msra.mxu0 0.0
  %729 = vmatprep.subr.mxu0 0.0
  %730 = vmatpush1.msra.mxu0 0.0
  %731 = vmatprep.subr.mxu0 0.0
  %732 = vmatpush1.msra.mxu0 0.0
  %733 = vmatprep.subr.mxu0 0.0
  %734 = vmatpush1.msra.mxu0 0.0
  %735 = vmatprep.subr.mxu0 0.0
  %736 = vmatpush1.msra.mxu0 0.0
  %737 = vmatprep.subr.mxu0 0.0
  %738 = vmatpush1.msra.mxu0 0.0
  %739 = vmatprep.subr.mxu0 0.0
  %740 = vmatpush1.msra.mxu0 0.0
  %741 = vmatprep.subr.mxu0 %v709
  %742 = vmatpush1.msra.mxu0 %v706
  %743 = vmatprep.subr.mxu0 0.0
  %744 = vmatpush2.msra.mxu0 0.0
  %745 = vmatprep.subr.mxu0 0.0
  %746 = vmatpush2.msra.mxu0 0.0
  %747 = vmatprep.subr.mxu0 0.0
  %748 = vmatpush2.msra.mxu0 0.0
  %749 = vmatprep.subr.mxu0 0.0
  %750 = vmatpush2.msra.mxu0 0.0
  %751 = vmatprep.subr.mxu0 0.0
  %752 = vmatpush2.msra.mxu0 0.0
  %753 = vmatprep.subr.mxu0 0.0
  %754 = vmatpush2.msra.mxu0 0.0
  %755 = vmatprep.subr.mxu0 0.0
  %756 = vmatpush2.msra.mxu0 0.0
  %757 = vmatprep.subr.mxu0 0.0
  %758 = vmatpush2.msra.mxu0 0.0
  %759 = vmatprep.subr.mxu0 0.0
  %760 = vmatpush2.msra.mxu0 0.0
  %761 = vmatprep.subr.mxu0 0.0
  %762 = vmatpush2.msra.mxu0 0.0
  %763 = vmatprep.subr.mxu0 0.0
  %764 = vmatpush2.msra.mxu0 0.0
  %765 = vmatprep.subr.mxu0 0.0
  %766 = vmatpush2.msra.mxu0 0.0
  %767 = vmatprep.subr.mxu0 0.0
  %768 = vmatpush2.msra.mxu0 0.0
  %769 = vmatprep.subr.mxu0 0.0
  %770 = vmatpush2.msra.mxu0 0.0
  %771 = vmatprep.subr.mxu0 0.0
  %772 = vmatpush2.msra.mxu0 0.0
  %773 = vmatprep.subr.mxu0 0.0
  %774 = vmatpush2.msra.mxu0 0.0
  %775 = vmatprep.mubr.f32.mxu0 0.0
  %776 = vmatmul.mubr.f32.gmra.mxu0 %v700
  %v777 = vpop.f32.mrf.mxu0
  %v778 = vadd.f32 0.0, %v777
  %v779 = vpop.f32.mrf.mxu0
  %v780 = vadd.f32 0.0, %v779
  %781 = vmatprep.mubr.f32.mxu0 0.0
  %782 = vmatmul.mubr.f32.gmra.mxu0 %v703
  %v783 = vpop.f32.mrf.mxu0
  %v784 = vadd.f32 0.0, %v783
  %v785 = vpop.f32.mrf.mxu0
  %v786 = vadd.f32 0.0, %v785
  %787 = vdwg.mxu0
  %v788 = vadd.f32 %v678, %v778
  %v789 = vadd.f32 %v679, %v780
  %v790 = vadd.f32 %v680, %v784
  %v791 = vadd.f32 %v681, %v786
  %792 = vrot.lane.b32.xlu0 %v41, 112
  %v793 = vpop.permute.xlu0 %792
  %794 = vrot.lane.b32.xlu0 %v43, 112
  %v795 = vpop.permute.xlu0 %794
  %vm796 = vcmp.lt.s32.totalorder %v50, 112
  %v797 = vsel %vm796, %v793, %v795
  %v798 = vsel %vm796, %v795, %v793
  %v799 = vlaneseq
  %v800 = vshrl.u32 %v799, 7
  %v801 = vsub.s32 7, %v800
  %v802 = vrot.slane %v35, %v801
  %v803 = vlaneseq
  %v804 = vshrl.u32 %v803, 7
  %v805 = vsub.s32 7, %v804
  %v806 = vrot.slane %v36, %v805
  %v807 = vmul.f32 %v797, %v802
  %v808 = vmul.f32 %v798, %v806
  %v810 = vsel %vm81, %v31, 0
  %v813 = vsel %vm81, %v32, 0
  %v816 = vsel %vm88, %v807, 0
  %v819 = vsel %vm88, %v808, 0
  %821 = vmatprep.subr.mxu0 0.0
  %822 = vmatpush1.msra.mxu0 0.0
  %823 = vmatprep.subr.mxu0 0.0
  %824 = vmatpush1.msra.mxu0 0.0
  %825 = vmatprep.subr.mxu0 0.0
  %826 = vmatpush1.msra.mxu0 0.0
  %827 = vmatprep.subr.mxu0 0.0
  %828 = vmatpush1.msra.mxu0 0.0
  %829 = vmatprep.subr.mxu0 0.0
  %830 = vmatpush1.msra.mxu0 0.0
  %831 = vmatprep.subr.mxu0 0.0
  %832 = vmatpush1.msra.mxu0 0.0
  %833 = vmatprep.subr.mxu0 0.0
  %834 = vmatpush1.msra.mxu0 0.0
  %835 = vmatprep.subr.mxu0 0.0
  %836 = vmatpush1.msra.mxu0 0.0
  %837 = vmatprep.subr.mxu0 0.0
  %838 = vmatpush1.msra.mxu0 0.0
  %839 = vmatprep.subr.mxu0 0.0
  %840 = vmatpush1.msra.mxu0 0.0
  %841 = vmatprep.subr.mxu0 0.0
  %842 = vmatpush1.msra.mxu0 0.0
  %843 = vmatprep.subr.mxu0 0.0
  %844 = vmatpush1.msra.mxu0 0.0
  %845 = vmatprep.subr.mxu0 0.0
  %846 = vmatpush1.msra.mxu0 0.0
  %847 = vmatprep.subr.mxu0 0.0
  %848 = vmatpush1.msra.mxu0 0.0
  %849 = vmatprep.subr.mxu0 0.0
  %850 = vmatpush1.msra.mxu0 0.0
  %851 = vmatprep.subr.mxu0 %v819
  %852 = vmatpush1.msra.mxu0 %v816
  %853 = vmatprep.subr.mxu0 0.0
  %854 = vmatpush2.msra.mxu0 0.0
  %855 = vmatprep.subr.mxu0 0.0
  %856 = vmatpush2.msra.mxu0 0.0
  %857 = vmatprep.subr.mxu0 0.0
  %858 = vmatpush2.msra.mxu0 0.0
  %859 = vmatprep.subr.mxu0 0.0
  %860 = vmatpush2.msra.mxu0 0.0
  %861 = vmatprep.subr.mxu0 0.0
  %862 = vmatpush2.msra.mxu0 0.0
  %863 = vmatprep.subr.mxu0 0.0
  %864 = vmatpush2.msra.mxu0 0.0
  %865 = vmatprep.subr.mxu0 0.0
  %866 = vmatpush2.msra.mxu0 0.0
  %867 = vmatprep.subr.mxu0 0.0
  %868 = vmatpush2.msra.mxu0 0.0
  %869 = vmatprep.subr.mxu0 0.0
  %870 = vmatpush2.msra.mxu0 0.0
  %871 = vmatprep.subr.mxu0 0.0
  %872 = vmatpush2.msra.mxu0 0.0
  %873 = vmatprep.subr.mxu0 0.0
  %874 = vmatpush2.msra.mxu0 0.0
  %875 = vmatprep.subr.mxu0 0.0
  %876 = vmatpush2.msra.mxu0 0.0
  %877 = vmatprep.subr.mxu0 0.0
  %878 = vmatpush2.msra.mxu0 0.0
  %879 = vmatprep.subr.mxu0 0.0
  %880 = vmatpush2.msra.mxu0 0.0
  %881 = vmatprep.subr.mxu0 0.0
  %882 = vmatpush2.msra.mxu0 0.0
  %883 = vmatprep.subr.mxu0 0.0
  %884 = vmatpush2.msra.mxu0 0.0
  %885 = vmatprep.mubr.f32.mxu0 0.0
  %886 = vmatmul.mubr.f32.gmra.mxu0 %v810
  %v887 = vpop.f32.mrf.mxu0
  %v888 = vadd.f32 0.0, %v887
  %v889 = vpop.f32.mrf.mxu0
  %v890 = vadd.f32 0.0, %v889
  %891 = vmatprep.mubr.f32.mxu0 0.0
  %892 = vmatmul.mubr.f32.gmra.mxu0 %v813
  %v893 = vpop.f32.mrf.mxu0
  %v894 = vadd.f32 0.0, %v893
  %v895 = vpop.f32.mrf.mxu0
  %v896 = vadd.f32 0.0, %v895
  %897 = vdwg.mxu0
  %v898 = vadd.f32 %v788, %v888
  %v899 = vadd.f32 %v789, %v890
  %v900 = vadd.f32 %v790, %v894
  %v901 = vadd.f32 %v791, %v896
  %902 = vrot.lane.b32.xlu0 %v41, 111
  %v903 = vpop.permute.xlu0 %902
  %904 = vrot.lane.b32.xlu0 %v43, 111
  %v905 = vpop.permute.xlu0 %904
  %vm906 = vcmp.lt.s32.totalorder %v50, 111
  %v907 = vsel %vm906, %v903, %v905
  %v908 = vsel %vm906, %v905, %v903
  %v909 = vlaneseq
  %v910 = vshrl.u32 %v909, 7
  %v911 = vsub.s32 0, %v910
  %v912 = vrot.slane %v37, %v911
  %v913 = vlaneseq
  %v914 = vshrl.u32 %v913, 7
  %v915 = vsub.s32 0, %v914
  %v916 = vrot.slane %v38, %v915
  %v917 = vmul.f32 %v907, %v912
  %v918 = vmul.f32 %v908, %v916
  %v920 = vsel %vm81, %v33, 0
  %v923 = vsel %vm81, %v34, 0
  %v926 = vsel %vm88, %v917, 0
  %v929 = vsel %vm88, %v918, 0
  %931 = vmatprep.subr.mxu0 0.0
  %932 = vmatpush1.msra.mxu0 0.0
  %933 = vmatprep.subr.mxu0 0.0
  %934 = vmatpush1.msra.mxu0 0.0
  %935 = vmatprep.subr.mxu0 0.0
  %936 = vmatpush1.msra.mxu0 0.0
  %937 = vmatprep.subr.mxu0 0.0
  %938 = vmatpush1.msra.mxu0 0.0
  %939 = vmatprep.subr.mxu0 0.0
  %940 = vmatpush1.msra.mxu0 0.0
  %941 = vmatprep.subr.mxu0 0.0
  %942 = vmatpush1.msra.mxu0 0.0
  %943 = vmatprep.subr.mxu0 0.0
  %944 = vmatpush1.msra.mxu0 0.0
  %945 = vmatprep.subr.mxu0 0.0
  %946 = vmatpush1.msra.mxu0 0.0
  %947 = vmatprep.subr.mxu0 0.0
  %948 = vmatpush1.msra.mxu0 0.0
  %949 = vmatprep.subr.mxu0 0.0
  %950 = vmatpush1.msra.mxu0 0.0
  %951 = vmatprep.subr.mxu0 0.0
  %952 = vmatpush1.msra.mxu0 0.0
  %953 = vmatprep.subr.mxu0 0.0
  %954 = vmatpush1.msra.mxu0 0.0
  %955 = vmatprep.subr.mxu0 0.0
  %956 = vmatpush1.msra.mxu0 0.0
  %957 = vmatprep.subr.mxu0 0.0
  %958 = vmatpush1.msra.mxu0 0.0
  %959 = vmatprep.subr.mxu0 0.0
  %960 = vmatpush1.msra.mxu0 0.0
  %961 = vmatprep.subr.mxu0 %v929
  %962 = vmatpush1.msra.mxu0 %v926
  %963 = vmatprep.subr.mxu0 0.0
  %964 = vmatpush2.msra.mxu0 0.0
  %965 = vmatprep.subr.mxu0 0.0
  %966 = vmatpush2.msra.mxu0 0.0
  %967 = vmatprep.subr.mxu0 0.0
  %968 = vmatpush2.msra.mxu0 0.0
  %969 = vmatprep.subr.mxu0 0.0
  %970 = vmatpush2.msra.mxu0 0.0
  %971 = vmatprep.subr.mxu0 0.0
  %972 = vmatpush2.msra.mxu0 0.0
  %973 = vmatprep.subr.mxu0 0.0
  %974 = vmatpush2.msra.mxu0 0.0
  %975 = vmatprep.subr.mxu0 0.0
  %976 = vmatpush2.msra.mxu0 0.0
  %977 = vmatprep.subr.mxu0 0.0
  %978 = vmatpush2.msra.mxu0 0.0
  %979 = vmatprep.subr.mxu0 0.0
  %980 = vmatpush2.msra.mxu0 0.0
  %981 = vmatprep.subr.mxu0 0.0
  %982 = vmatpush2.msra.mxu0 0.0
  %983 = vmatprep.subr.mxu0 0.0
  %984 = vmatpush2.msra.mxu0 0.0
  %985 = vmatprep.subr.mxu0 0.0
  %986 = vmatpush2.msra.mxu0 0.0
  %987 = vmatprep.subr.mxu0 0.0
  %988 = vmatpush2.msra.mxu0 0.0
  %989 = vmatprep.subr.mxu0 0.0
  %990 = vmatpush2.msra.mxu0 0.0
  %991 = vmatprep.subr.mxu0 0.0
  %992 = vmatpush2.msra.mxu0 0.0
  %993 = vmatprep.subr.mxu0 0.0
  %994 = vmatpush2.msra.mxu0 0.0
  %995 = vmatprep.mubr.f32.mxu0 0.0
  %996 = vmatmul.mubr.f32.gmra.mxu0 %v920
  %v997 = vpop.f32.mrf.mxu0
  %v998 = vadd.f32 0.0, %v997
  %v999 = vpop.f32.mrf.mxu0
  %v1000 = vadd.f32 0.0, %v999
  %1001 = vmatprep.mubr.f32.mxu0 0.0
  %1002 = vmatmul.mubr.f32.gmra.mxu0 %v923
  %v1003 = vpop.f32.mrf.mxu0
  %v1004 = vadd.f32 0.0, %v1003
  %v1005 = vpop.f32.mrf.mxu0
  %v1006 = vadd.f32 0.0, %v1005
  %1007 = vdwg.mxu0
  %v1008 = vadd.f32 %v898, %v998
  %v1009 = vadd.f32 %v899, %v1000
  %v1010 = vadd.f32 %v900, %v1004
  %v1011 = vadd.f32 %v901, %v1006
  %1013 = vset.pattern.permute.xlu0 0
  %1014 = vperm.xlu0 %1013, %v39
  %v1015 = vpop.permute.xlu0 %1014
  %1018 = vset.pattern.permute.xlu0 0
  %1019 = vperm.xlu0 %1018, %v40
  %v1020 = vpop.permute.xlu0 %1019
  %v1022 = vadd.f32 %v1008, %v1015
  %v1023 = vadd.f32 %v1009, %v1015
  %v1024 = vadd.f32 %v1010, %v1020
  %v1025 = vadd.f32 %v1011, %v1020
  %1026 = vst [vmem:[%s4] sm:$0xff] %v1022
  %1027 = vst [vmem:[%s4 + $0x8] sm:$0xff] %v1023
  %1028 = vst [vmem:[%s4 + $0x10] sm:$0xf] %v1024
  %1029 = vst [vmem:[%s4 + $0x18] sm:$0xf] %v1025
  %s1030 = scalar_lea.vmem %s0, 8
  %v1031 = vld [vmem:[%s1030] sm:$0xff]
  %v1033 = vcombine.high %v1031, %v1031
  %1035 = vrot.lane.b32.xlu0 %v1031, 17
  %v1036 = vpop.permute.xlu0 %1035
  %1037 = vrot.lane.b32.xlu0 %v1033, 17
  %v1038 = vpop.permute.xlu0 %1037
  %v1039 = vsel %vm51, %v1036, %v1038
  %v1040 = vsel %vm51, %v1038, %v1036
  %v1041 = vmul.f32 %v1040, %v57
  %v1042 = vmul.f32 %v1039, %v61
  %1043 = vrot.lane.b32.xlu0 %v1031, 16
  %v1044 = vpop.permute.xlu0 %1043
  %1045 = vrot.lane.b32.xlu0 %v1033, 16
  %v1046 = vpop.permute.xlu0 %1045
  %v1047 = vsel %vm68, %v1044, %v1046
  %v1048 = vsel %vm68, %v1046, %v1044
  %v1049 = vmul.f32 %v1048, %v74
  %v1050 = vmul.f32 %v1047, %v78
  %v1052 = vsel %vm88, %v1049, 0
  %v1055 = vsel %vm88, %v1050, 0
  %1057 = vmatprep.subr.mxu0 0.0
  %1058 = vmatpush1.msra.mxu0 0.0
  %1059 = vmatprep.subr.mxu0 0.0
  %1060 = vmatpush1.msra.mxu0 0.0
  %1061 = vmatprep.subr.mxu0 0.0
  %1062 = vmatpush1.msra.mxu0 0.0
  %1063 = vmatprep.subr.mxu0 0.0
  %1064 = vmatpush1.msra.mxu0 0.0
  %1065 = vmatprep.subr.mxu0 0.0
  %1066 = vmatpush1.msra.mxu0 0.0
  %1067 = vmatprep.subr.mxu0 0.0
  %1068 = vmatpush1.msra.mxu0 0.0
  %1069 = vmatprep.subr.mxu0 0.0
  %1070 = vmatpush1.msra.mxu0 0.0
  %1071 = vmatprep.subr.mxu0 0.0
  %1072 = vmatpush1.msra.mxu0 0.0
  %1073 = vmatprep.subr.mxu0 0.0
  %1074 = vmatpush1.msra.mxu0 0.0
  %1075 = vmatprep.subr.mxu0 0.0
  %1076 = vmatpush1.msra.mxu0 0.0
  %1077 = vmatprep.subr.mxu0 0.0
  %1078 = vmatpush1.msra.mxu0 0.0
  %1079 = vmatprep.subr.mxu0 0.0
  %1080 = vmatpush1.msra.mxu0 0.0
  %1081 = vmatprep.subr.mxu0 0.0
  %1082 = vmatpush1.msra.mxu0 0.0
  %1083 = vmatprep.subr.mxu0 0.0
  %1084 = vmatpush1.msra.mxu0 0.0
  %1085 = vmatprep.subr.mxu0 0.0
  %1086 = vmatpush1.msra.mxu0 0.0
  %1087 = vmatprep.subr.mxu0 %v1055
  %1088 = vmatpush1.msra.mxu0 %v1052
  %1089 = vmatprep.subr.mxu0 0.0
  %1090 = vmatpush2.msra.mxu0 0.0
  %1091 = vmatprep.subr.mxu0 0.0
  %1092 = vmatpush2.msra.mxu0 0.0
  %1093 = vmatprep.subr.mxu0 0.0
  %1094 = vmatpush2.msra.mxu0 0.0
  %1095 = vmatprep.subr.mxu0 0.0
  %1096 = vmatpush2.msra.mxu0 0.0
  %1097 = vmatprep.subr.mxu0 0.0
  %1098 = vmatpush2.msra.mxu0 0.0
  %1099 = vmatprep.subr.mxu0 0.0
  %1100 = vmatpush2.msra.mxu0 0.0
  %1101 = vmatprep.subr.mxu0 0.0
  %1102 = vmatpush2.msra.mxu0 0.0
  %1103 = vmatprep.subr.mxu0 0.0
  %1104 = vmatpush2.msra.mxu0 0.0
  %1105 = vmatprep.subr.mxu0 0.0
  %1106 = vmatpush2.msra.mxu0 0.0
  %1107 = vmatprep.subr.mxu0 0.0
  %1108 = vmatpush2.msra.mxu0 0.0
  %1109 = vmatprep.subr.mxu0 0.0
  %1110 = vmatpush2.msra.mxu0 0.0
  %1111 = vmatprep.subr.mxu0 0.0
  %1112 = vmatpush2.msra.mxu0 0.0
  %1113 = vmatprep.subr.mxu0 0.0
  %1114 = vmatpush2.msra.mxu0 0.0
  %1115 = vmatprep.subr.mxu0 0.0
  %1116 = vmatpush2.msra.mxu0 0.0
  %1117 = vmatprep.subr.mxu0 0.0
  %1118 = vmatpush2.msra.mxu0 0.0
  %1119 = vmatprep.subr.mxu0 0.0
  %1120 = vmatpush2.msra.mxu0 0.0
  %1121 = vmatprep.mubr.f32.mxu0 0.0
  %1122 = vmatmul.mubr.f32.gmra.mxu0 %v83
  %v1123 = vpop.f32.mrf.mxu0
  %v1124 = vadd.f32 0.0, %v1123
  %v1125 = vpop.f32.mrf.mxu0
  %v1126 = vadd.f32 0.0, %v1125
  %1127 = vmatprep.mubr.f32.mxu0 0.0
  %1128 = vmatmul.mubr.f32.gmra.mxu0 %v86
  %v1129 = vpop.f32.mrf.mxu0
  %v1130 = vadd.f32 0.0, %v1129
  %v1131 = vpop.f32.mrf.mxu0
  %v1132 = vadd.f32 0.0, %v1131
  %1133 = vdwg.mxu0
  %v1135 = vsel %vm88, %v1041, 0
  %v1138 = vsel %vm88, %v1042, 0
  %1140 = vmatprep.subr.mxu0 0.0
  %1141 = vmatpush1.msra.mxu0 0.0
  %1142 = vmatprep.subr.mxu0 0.0
  %1143 = vmatpush1.msra.mxu0 0.0
  %1144 = vmatprep.subr.mxu0 0.0
  %1145 = vmatpush1.msra.mxu0 0.0
  %1146 = vmatprep.subr.mxu0 0.0
  %1147 = vmatpush1.msra.mxu0 0.0
  %1148 = vmatprep.subr.mxu0 0.0
  %1149 = vmatpush1.msra.mxu0 0.0
  %1150 = vmatprep.subr.mxu0 0.0
  %1151 = vmatpush1.msra.mxu0 0.0
  %1152 = vmatprep.subr.mxu0 0.0
  %1153 = vmatpush1.msra.mxu0 0.0
  %1154 = vmatprep.subr.mxu0 0.0
  %1155 = vmatpush1.msra.mxu0 0.0
  %1156 = vmatprep.subr.mxu0 0.0
  %1157 = vmatpush1.msra.mxu0 0.0
  %1158 = vmatprep.subr.mxu0 0.0
  %1159 = vmatpush1.msra.mxu0 0.0
  %1160 = vmatprep.subr.mxu0 0.0
  %1161 = vmatpush1.msra.mxu0 0.0
  %1162 = vmatprep.subr.mxu0 0.0
  %1163 = vmatpush1.msra.mxu0 0.0
  %1164 = vmatprep.subr.mxu0 0.0
  %1165 = vmatpush1.msra.mxu0 0.0
  %1166 = vmatprep.subr.mxu0 0.0
  %1167 = vmatpush1.msra.mxu0 0.0
  %1168 = vmatprep.subr.mxu0 0.0
  %1169 = vmatpush1.msra.mxu0 0.0
  %1170 = vmatprep.subr.mxu0 %v1138
  %1171 = vmatpush1.msra.mxu0 %v1135
  %1172 = vmatprep.subr.mxu0 0.0
  %1173 = vmatpush2.msra.mxu0 0.0
  %1174 = vmatprep.subr.mxu0 0.0
  %1175 = vmatpush2.msra.mxu0 0.0
  %1176 = vmatprep.subr.mxu0 0.0
  %1177 = vmatpush2.msra.mxu0 0.0
  %1178 = vmatprep.subr.mxu0 0.0
  %1179 = vmatpush2.msra.mxu0 0.0
  %1180 = vmatprep.subr.mxu0 0.0
  %1181 = vmatpush2.msra.mxu0 0.0
  %1182 = vmatprep.subr.mxu0 0.0
  %1183 = vmatpush2.msra.mxu0 0.0
  %1184 = vmatprep.subr.mxu0 0.0
  %1185 = vmatpush2.msra.mxu0 0.0
  %1186 = vmatprep.subr.mxu0 0.0
  %1187 = vmatpush2.msra.mxu0 0.0
  %1188 = vmatprep.subr.mxu0 0.0
  %1189 = vmatpush2.msra.mxu0 0.0
  %1190 = vmatprep.subr.mxu0 0.0
  %1191 = vmatpush2.msra.mxu0 0.0
  %1192 = vmatprep.subr.mxu0 0.0
  %1193 = vmatpush2.msra.mxu0 0.0
  %1194 = vmatprep.subr.mxu0 0.0
  %1195 = vmatpush2.msra.mxu0 0.0
  %1196 = vmatprep.subr.mxu0 0.0
  %1197 = vmatpush2.msra.mxu0 0.0
  %1198 = vmatprep.subr.mxu0 0.0
  %1199 = vmatpush2.msra.mxu0 0.0
  %1200 = vmatprep.subr.mxu0 0.0
  %1201 = vmatpush2.msra.mxu0 0.0
  %1202 = vmatprep.subr.mxu0 0.0
  %1203 = vmatpush2.msra.mxu0 0.0
  %1204 = vmatprep.mubr.f32.mxu0 0.0
  %1205 = vmatmul.mubr.f32.gmra.mxu0 %v173
  %v1206 = vpop.f32.mrf.mxu0
  %v1207 = vadd.f32 %v1124, %v1206
  %v1208 = vpop.f32.mrf.mxu0
  %v1209 = vadd.f32 %v1126, %v1208
  %1210 = vmatprep.mubr.f32.mxu0 0.0
  %1211 = vmatmul.mubr.f32.gmra.mxu0 %v176
  %v1212 = vpop.f32.mrf.mxu0
  %v1213 = vadd.f32 %v1130, %v1212
  %v1214 = vpop.f32.mrf.mxu0
  %v1215 = vadd.f32 %v1132, %v1214
  %1216 = vdwg.mxu0
  %1217 = vrot.lane.b32.xlu0 %v1031, 15
  %v1218 = vpop.permute.xlu0 %1217
  %1219 = vrot.lane.b32.xlu0 %v1033, 15
  %v1220 = vpop.permute.xlu0 %1219
  %v1221 = vsel %vm265, %v1218, %v1220
  %v1222 = vsel %vm265, %v1220, %v1218
  %v1223 = vmul.f32 %v1222, %v271
  %v1224 = vmul.f32 %v1221, %v275
  %v1226 = vsel %vm88, %v1223, 0
  %v1229 = vsel %vm88, %v1224, 0
  %1231 = vmatprep.subr.mxu0 0.0
  %1232 = vmatpush1.msra.mxu0 0.0
  %1233 = vmatprep.subr.mxu0 0.0
  %1234 = vmatpush1.msra.mxu0 0.0
  %1235 = vmatprep.subr.mxu0 0.0
  %1236 = vmatpush1.msra.mxu0 0.0
  %1237 = vmatprep.subr.mxu0 0.0
  %1238 = vmatpush1.msra.mxu0 0.0
  %1239 = vmatprep.subr.mxu0 0.0
  %1240 = vmatpush1.msra.mxu0 0.0
  %1241 = vmatprep.subr.mxu0 0.0
  %1242 = vmatpush1.msra.mxu0 0.0
  %1243 = vmatprep.subr.mxu0 0.0
  %1244 = vmatpush1.msra.mxu0 0.0
  %1245 = vmatprep.subr.mxu0 0.0
  %1246 = vmatpush1.msra.mxu0 0.0
  %1247 = vmatprep.subr.mxu0 0.0
  %1248 = vmatpush1.msra.mxu0 0.0
  %1249 = vmatprep.subr.mxu0 0.0
  %1250 = vmatpush1.msra.mxu0 0.0
  %1251 = vmatprep.subr.mxu0 0.0
  %1252 = vmatpush1.msra.mxu0 0.0
  %1253 = vmatprep.subr.mxu0 0.0
  %1254 = vmatpush1.msra.mxu0 0.0
  %1255 = vmatprep.subr.mxu0 0.0
  %1256 = vmatpush1.msra.mxu0 0.0
  %1257 = vmatprep.subr.mxu0 0.0
  %1258 = vmatpush1.msra.mxu0 0.0
  %1259 = vmatprep.subr.mxu0 0.0
  %1260 = vmatpush1.msra.mxu0 0.0
  %1261 = vmatprep.subr.mxu0 %v1229
  %1262 = vmatpush1.msra.mxu0 %v1226
  %1263 = vmatprep.subr.mxu0 0.0
  %1264 = vmatpush2.msra.mxu0 0.0
  %1265 = vmatprep.subr.mxu0 0.0
  %1266 = vmatpush2.msra.mxu0 0.0
  %1267 = vmatprep.subr.mxu0 0.0
  %1268 = vmatpush2.msra.mxu0 0.0
  %1269 = vmatprep.subr.mxu0 0.0
  %1270 = vmatpush2.msra.mxu0 0.0
  %1271 = vmatprep.subr.mxu0 0.0
  %1272 = vmatpush2.msra.mxu0 0.0
  %1273 = vmatprep.subr.mxu0 0.0
  %1274 = vmatpush2.msra.mxu0 0.0
  %1275 = vmatprep.subr.mxu0 0.0
  %1276 = vmatpush2.msra.mxu0 0.0
  %1277 = vmatprep.subr.mxu0 0.0
  %1278 = vmatpush2.msra.mxu0 0.0
  %1279 = vmatprep.subr.mxu0 0.0
  %1280 = vmatpush2.msra.mxu0 0.0
  %1281 = vmatprep.subr.mxu0 0.0
  %1282 = vmatpush2.msra.mxu0 0.0
  %1283 = vmatprep.subr.mxu0 0.0
  %1284 = vmatpush2.msra.mxu0 0.0
  %1285 = vmatprep.subr.mxu0 0.0
  %1286 = vmatpush2.msra.mxu0 0.0
  %1287 = vmatprep.subr.mxu0 0.0
  %1288 = vmatpush2.msra.mxu0 0.0
  %1289 = vmatprep.subr.mxu0 0.0
  %1290 = vmatpush2.msra.mxu0 0.0
  %1291 = vmatprep.subr.mxu0 0.0
  %1292 = vmatpush2.msra.mxu0 0.0
  %1293 = vmatprep.subr.mxu0 0.0
  %1294 = vmatpush2.msra.mxu0 0.0
  %1295 = vmatprep.mubr.f32.mxu0 0.0
  %1296 = vmatmul.mubr.f32.gmra.mxu0 %v279
  %v1297 = vpop.f32.mrf.mxu0
  %v1298 = vadd.f32 0.0, %v1297
  %v1299 = vpop.f32.mrf.mxu0
  %v1300 = vadd.f32 0.0, %v1299
  %1301 = vmatprep.mubr.f32.mxu0 0.0
  %1302 = vmatmul.mubr.f32.gmra.mxu0 %v282
  %v1303 = vpop.f32.mrf.mxu0
  %v1304 = vadd.f32 0.0, %v1303
  %v1305 = vpop.f32.mrf.mxu0
  %v1306 = vadd.f32 0.0, %v1305
  %1307 = vdwg.mxu0
  %v1308 = vadd.f32 %v1207, %v1298
  %v1309 = vadd.f32 %v1209, %v1300
  %v1310 = vadd.f32 %v1213, %v1304
  %v1311 = vadd.f32 %v1215, %v1306
  %1312 = vrot.lane.b32.xlu0 %v1031, 1
  %v1313 = vpop.permute.xlu0 %1312
  %1314 = vrot.lane.b32.xlu0 %v1033, 1
  %v1315 = vpop.permute.xlu0 %1314
  %v1316 = vsel %vm375, %v1313, %v1315
  %v1317 = vsel %vm375, %v1315, %v1313
  %v1318 = vmul.f32 %v1317, %v381
  %v1319 = vmul.f32 %v1316, %v385
  %v1321 = vsel %vm88, %v1318, 0
  %v1324 = vsel %vm88, %v1319, 0
  %1326 = vmatprep.subr.mxu0 0.0
  %1327 = vmatpush1.msra.mxu0 0.0
  %1328 = vmatprep.subr.mxu0 0.0
  %1329 = vmatpush1.msra.mxu0 0.0
  %1330 = vmatprep.subr.mxu0 0.0
  %1331 = vmatpush1.msra.mxu0 0.0
  %1332 = vmatprep.subr.mxu0 0.0
  %1333 = vmatpush1.msra.mxu0 0.0
  %1334 = vmatprep.subr.mxu0 0.0
  %1335 = vmatpush1.msra.mxu0 0.0
  %1336 = vmatprep.subr.mxu0 0.0
  %1337 = vmatpush1.msra.mxu0 0.0
  %1338 = vmatprep.subr.mxu0 0.0
  %1339 = vmatpush1.msra.mxu0 0.0
  %1340 = vmatprep.subr.mxu0 0.0
  %1341 = vmatpush1.msra.mxu0 0.0
  %1342 = vmatprep.subr.mxu0 0.0
  %1343 = vmatpush1.msra.mxu0 0.0
  %1344 = vmatprep.subr.mxu0 0.0
  %1345 = vmatpush1.msra.mxu0 0.0
  %1346 = vmatprep.subr.mxu0 0.0
  %1347 = vmatpush1.msra.mxu0 0.0
  %1348 = vmatprep.subr.mxu0 0.0
  %1349 = vmatpush1.msra.mxu0 0.0
  %1350 = vmatprep.subr.mxu0 0.0
  %1351 = vmatpush1.msra.mxu0 0.0
  %1352 = vmatprep.subr.mxu0 0.0
  %1353 = vmatpush1.msra.mxu0 0.0
  %1354 = vmatprep.subr.mxu0 0.0
  %1355 = vmatpush1.msra.mxu0 0.0
  %1356 = vmatprep.subr.mxu0 %v1324
  %1357 = vmatpush1.msra.mxu0 %v1321
  %1358 = vmatprep.subr.mxu0 0.0
  %1359 = vmatpush2.msra.mxu0 0.0
  %1360 = vmatprep.subr.mxu0 0.0
  %1361 = vmatpush2.msra.mxu0 0.0
  %1362 = vmatprep.subr.mxu0 0.0
  %1363 = vmatpush2.msra.mxu0 0.0
  %1364 = vmatprep.subr.mxu0 0.0
  %1365 = vmatpush2.msra.mxu0 0.0
  %1366 = vmatprep.subr.mxu0 0.0
  %1367 = vmatpush2.msra.mxu0 0.0
  %1368 = vmatprep.subr.mxu0 0.0
  %1369 = vmatpush2.msra.mxu0 0.0
  %1370 = vmatprep.subr.mxu0 0.0
  %1371 = vmatpush2.msra.mxu0 0.0
  %1372 = vmatprep.subr.mxu0 0.0
  %1373 = vmatpush2.msra.mxu0 0.0
  %1374 = vmatprep.subr.mxu0 0.0
  %1375 = vmatpush2.msra.mxu0 0.0
  %1376 = vmatprep.subr.mxu0 0.0
  %1377 = vmatpush2.msra.mxu0 0.0
  %1378 = vmatprep.subr.mxu0 0.0
  %1379 = vmatpush2.msra.mxu0 0.0
  %1380 = vmatprep.subr.mxu0 0.0
  %1381 = vmatpush2.msra.mxu0 0.0
  %1382 = vmatprep.subr.mxu0 0.0
  %1383 = vmatpush2.msra.mxu0 0.0
  %1384 = vmatprep.subr.mxu0 0.0
  %1385 = vmatpush2.msra.mxu0 0.0
  %1386 = vmatprep.subr.mxu0 0.0
  %1387 = vmatpush2.msra.mxu0 0.0
  %1388 = vmatprep.subr.mxu0 0.0
  %1389 = vmatpush2.msra.mxu0 0.0
  %1390 = vmatprep.mubr.f32.mxu0 0.0
  %1391 = vmatmul.mubr.f32.gmra.mxu0 %v389
  %v1392 = vpop.f32.mrf.mxu0
  %v1393 = vadd.f32 0.0, %v1392
  %v1394 = vpop.f32.mrf.mxu0
  %v1395 = vadd.f32 0.0, %v1394
  %1396 = vmatprep.mubr.f32.mxu0 0.0
  %1397 = vmatmul.mubr.f32.gmra.mxu0 %v392
  %v1398 = vpop.f32.mrf.mxu0
  %v1399 = vadd.f32 0.0, %v1398
  %v1400 = vpop.f32.mrf.mxu0
  %v1401 = vadd.f32 0.0, %v1400
  %1402 = vdwg.mxu0
  %v1403 = vadd.f32 %v1308, %v1393
  %v1404 = vadd.f32 %v1309, %v1395
  %v1405 = vadd.f32 %v1310, %v1399
  %v1406 = vadd.f32 %v1311, %v1401
  %v1407 = vsel %vm88, %v1031, 0
  %v1409 = vsel %vm88, %v1033, 0
  %1411 = vmatprep.subr.mxu0 0.0
  %1412 = vmatpush1.msra.mxu0 0.0
  %1413 = vmatprep.subr.mxu0 0.0
  %1414 = vmatpush1.msra.mxu0 0.0
  %1415 = vmatprep.subr.mxu0 0.0
  %1416 = vmatpush1.msra.mxu0 0.0
  %1417 = vmatprep.subr.mxu0 0.0
  %1418 = vmatpush1.msra.mxu0 0.0
  %1419 = vmatprep.subr.mxu0 0.0
  %1420 = vmatpush1.msra.mxu0 0.0
  %1421 = vmatprep.subr.mxu0 0.0
  %1422 = vmatpush1.msra.mxu0 0.0
  %1423 = vmatprep.subr.mxu0 0.0
  %1424 = vmatpush1.msra.mxu0 0.0
  %1425 = vmatprep.subr.mxu0 0.0
  %1426 = vmatpush1.msra.mxu0 0.0
  %1427 = vmatprep.subr.mxu0 0.0
  %1428 = vmatpush1.msra.mxu0 0.0
  %1429 = vmatprep.subr.mxu0 0.0
  %1430 = vmatpush1.msra.mxu0 0.0
  %1431 = vmatprep.subr.mxu0 0.0
  %1432 = vmatpush1.msra.mxu0 0.0
  %1433 = vmatprep.subr.mxu0 0.0
  %1434 = vmatpush1.msra.mxu0 0.0
  %1435 = vmatprep.subr.mxu0 0.0
  %1436 = vmatpush1.msra.mxu0 0.0
  %1437 = vmatprep.subr.mxu0 0.0
  %1438 = vmatpush1.msra.mxu0 0.0
  %1439 = vmatprep.subr.mxu0 0.0
  %1440 = vmatpush1.msra.mxu0 0.0
  %1441 = vmatprep.subr.mxu0 %v1409
  %1442 = vmatpush1.msra.mxu0 %v1407
  %1443 = vmatprep.subr.mxu0 0.0
  %1444 = vmatpush2.msra.mxu0 0.0
  %1445 = vmatprep.subr.mxu0 0.0
  %1446 = vmatpush2.msra.mxu0 0.0
  %1447 = vmatprep.subr.mxu0 0.0
  %1448 = vmatpush2.msra.mxu0 0.0
  %1449 = vmatprep.subr.mxu0 0.0
  %1450 = vmatpush2.msra.mxu0 0.0
  %1451 = vmatprep.subr.mxu0 0.0
  %1452 = vmatpush2.msra.mxu0 0.0
  %1453 = vmatprep.subr.mxu0 0.0
  %1454 = vmatpush2.msra.mxu0 0.0
  %1455 = vmatprep.subr.mxu0 0.0
  %1456 = vmatpush2.msra.mxu0 0.0
  %1457 = vmatprep.subr.mxu0 0.0
  %1458 = vmatpush2.msra.mxu0 0.0
  %1459 = vmatprep.subr.mxu0 0.0
  %1460 = vmatpush2.msra.mxu0 0.0
  %1461 = vmatprep.subr.mxu0 0.0
  %1462 = vmatpush2.msra.mxu0 0.0
  %1463 = vmatprep.subr.mxu0 0.0
  %1464 = vmatpush2.msra.mxu0 0.0
  %1465 = vmatprep.subr.mxu0 0.0
  %1466 = vmatpush2.msra.mxu0 0.0
  %1467 = vmatprep.subr.mxu0 0.0
  %1468 = vmatpush2.msra.mxu0 0.0
  %1469 = vmatprep.subr.mxu0 0.0
  %1470 = vmatpush2.msra.mxu0 0.0
  %1471 = vmatprep.subr.mxu0 0.0
  %1472 = vmatpush2.msra.mxu0 0.0
  %1473 = vmatprep.subr.mxu0 0.0
  %1474 = vmatpush2.msra.mxu0 0.0
  %1475 = vmatprep.mubr.f32.mxu0 0.0
  %1476 = vmatmul.mubr.f32.gmra.mxu0 %v482
  %v1477 = vpop.f32.mrf.mxu0
  %v1478 = vadd.f32 0.0, %v1477
  %v1479 = vpop.f32.mrf.mxu0
  %v1480 = vadd.f32 0.0, %v1479
  %1481 = vmatprep.mubr.f32.mxu0 0.0
  %1482 = vmatmul.mubr.f32.gmra.mxu0 %v485
  %v1483 = vpop.f32.mrf.mxu0
  %v1484 = vadd.f32 0.0, %v1483
  %v1485 = vpop.f32.mrf.mxu0
  %v1486 = vadd.f32 0.0, %v1485
  %1487 = vdwg.mxu0
  %v1488 = vadd.f32 %v1403, %v1478
  %v1489 = vadd.f32 %v1404, %v1480
  %v1490 = vadd.f32 %v1405, %v1484
  %v1491 = vadd.f32 %v1406, %v1486
  %1492 = vrot.lane.b32.xlu0 %v1031, 127
  %v1493 = vpop.permute.xlu0 %1492
  %1494 = vrot.lane.b32.xlu0 %v1033, 127
  %v1495 = vpop.permute.xlu0 %1494
  %v1496 = vsel %vm576, %v1493, %v1495
  %v1497 = vsel %vm576, %v1495, %v1493
  %v1498 = vmul.f32 %v1496, %v582
  %v1499 = vmul.f32 %v1497, %v586
  %v1501 = vsel %vm88, %v1498, 0
  %v1504 = vsel %vm88, %v1499, 0
  %1506 = vmatprep.subr.mxu0 0.0
  %1507 = vmatpush1.msra.mxu0 0.0
  %1508 = vmatprep.subr.mxu0 0.0
  %1509 = vmatpush1.msra.mxu0 0.0
  %1510 = vmatprep.subr.mxu0 0.0
  %1511 = vmatpush1.msra.mxu0 0.0
  %1512 = vmatprep.subr.mxu0 0.0
  %1513 = vmatpush1.msra.mxu0 0.0
  %1514 = vmatprep.subr.mxu0 0.0
  %1515 = vmatpush1.msra.mxu0 0.0
  %1516 = vmatprep.subr.mxu0 0.0
  %1517 = vmatpush1.msra.mxu0 0.0
  %1518 = vmatprep.subr.mxu0 0.0
  %1519 = vmatpush1.msra.mxu0 0.0
  %1520 = vmatprep.subr.mxu0 0.0
  %1521 = vmatpush1.msra.mxu0 0.0
  %1522 = vmatprep.subr.mxu0 0.0
  %1523 = vmatpush1.msra.mxu0 0.0
  %1524 = vmatprep.subr.mxu0 0.0
  %1525 = vmatpush1.msra.mxu0 0.0
  %1526 = vmatprep.subr.mxu0 0.0
  %1527 = vmatpush1.msra.mxu0 0.0
  %1528 = vmatprep.subr.mxu0 0.0
  %1529 = vmatpush1.msra.mxu0 0.0
  %1530 = vmatprep.subr.mxu0 0.0
  %1531 = vmatpush1.msra.mxu0 0.0
  %1532 = vmatprep.subr.mxu0 0.0
  %1533 = vmatpush1.msra.mxu0 0.0
  %1534 = vmatprep.subr.mxu0 0.0
  %1535 = vmatpush1.msra.mxu0 0.0
  %1536 = vmatprep.subr.mxu0 %v1504
  %1537 = vmatpush1.msra.mxu0 %v1501
  %1538 = vmatprep.subr.mxu0 0.0
  %1539 = vmatpush2.msra.mxu0 0.0
  %1540 = vmatprep.subr.mxu0 0.0
  %1541 = vmatpush2.msra.mxu0 0.0
  %1542 = vmatprep.subr.mxu0 0.0
  %1543 = vmatpush2.msra.mxu0 0.0
  %1544 = vmatprep.subr.mxu0 0.0
  %1545 = vmatpush2.msra.mxu0 0.0
  %1546 = vmatprep.subr.mxu0 0.0
  %1547 = vmatpush2.msra.mxu0 0.0
  %1548 = vmatprep.subr.mxu0 0.0
  %1549 = vmatpush2.msra.mxu0 0.0
  %1550 = vmatprep.subr.mxu0 0.0
  %1551 = vmatpush2.msra.mxu0 0.0
  %1552 = vmatprep.subr.mxu0 0.0
  %1553 = vmatpush2.msra.mxu0 0.0
  %1554 = vmatprep.subr.mxu0 0.0
  %1555 = vmatpush2.msra.mxu0 0.0
  %1556 = vmatprep.subr.mxu0 0.0
  %1557 = vmatpush2.msra.mxu0 0.0
  %1558 = vmatprep.subr.mxu0 0.0
  %1559 = vmatpush2.msra.mxu0 0.0
  %1560 = vmatprep.subr.mxu0 0.0
  %1561 = vmatpush2.msra.mxu0 0.0
  %1562 = vmatprep.subr.mxu0 0.0
  %1563 = vmatpush2.msra.mxu0 0.0
  %1564 = vmatprep.subr.mxu0 0.0
  %1565 = vmatpush2.msra.mxu0 0.0
  %1566 = vmatprep.subr.mxu0 0.0
  %1567 = vmatpush2.msra.mxu0 0.0
  %1568 = vmatprep.subr.mxu0 0.0
  %1569 = vmatpush2.msra.mxu0 0.0
  %1570 = vmatprep.mubr.f32.mxu0 0.0
  %1571 = vmatmul.mubr.f32.gmra.mxu0 %v590
  %v1572 = vpop.f32.mrf.mxu0
  %v1573 = vadd.f32 0.0, %v1572
  %v1574 = vpop.f32.mrf.mxu0
  %v1575 = vadd.f32 0.0, %v1574
  %1576 = vmatprep.mubr.f32.mxu0 0.0
  %1577 = vmatmul.mubr.f32.gmra.mxu0 %v593
  %v1578 = vpop.f32.mrf.mxu0
  %v1579 = vadd.f32 0.0, %v1578
  %v1580 = vpop.f32.mrf.mxu0
  %v1581 = vadd.f32 0.0, %v1580
  %1582 = vdwg.mxu0
  %v1583 = vadd.f32 %v1488, %v1573
  %v1584 = vadd.f32 %v1489, %v1575
  %v1585 = vadd.f32 %v1490, %v1579
  %v1586 = vadd.f32 %v1491, %v1581
  %1587 = vrot.lane.b32.xlu0 %v1031, 113
  %v1588 = vpop.permute.xlu0 %1587
  %1589 = vrot.lane.b32.xlu0 %v1033, 113
  %v1590 = vpop.permute.xlu0 %1589
  %v1591 = vsel %vm686, %v1588, %v1590
  %v1592 = vsel %vm686, %v1590, %v1588
  %v1593 = vmul.f32 %v1591, %v692
  %v1594 = vmul.f32 %v1592, %v696
  %v1596 = vsel %vm88, %v1593, 0
  %v1599 = vsel %vm88, %v1594, 0
  %1601 = vmatprep.subr.mxu0 0.0
  %1602 = vmatpush1.msra.mxu0 0.0
  %1603 = vmatprep.subr.mxu0 0.0
  %1604 = vmatpush1.msra.mxu0 0.0
  %1605 = vmatprep.subr.mxu0 0.0
  %1606 = vmatpush1.msra.mxu0 0.0
  %1607 = vmatprep.subr.mxu0 0.0
  %1608 = vmatpush1.msra.mxu0 0.0
  %1609 = vmatprep.subr.mxu0 0.0
  %1610 = vmatpush1.msra.mxu0 0.0
  %1611 = vmatprep.subr.mxu0 0.0
  %1612 = vmatpush1.msra.mxu0 0.0
  %1613 = vmatprep.subr.mxu0 0.0
  %1614 = vmatpush1.msra.mxu0 0.0
  %1615 = vmatprep.subr.mxu0 0.0
  %1616 = vmatpush1.msra.mxu0 0.0
  %1617 = vmatprep.subr.mxu0 0.0
  %1618 = vmatpush1.msra.mxu0 0.0
  %1619 = vmatprep.subr.mxu0 0.0
  %1620 = vmatpush1.msra.mxu0 0.0
  %1621 = vmatprep.subr.mxu0 0.0
  %1622 = vmatpush1.msra.mxu0 0.0
  %1623 = vmatprep.subr.mxu0 0.0
  %1624 = vmatpush1.msra.mxu0 0.0
  %1625 = vmatprep.subr.mxu0 0.0
  %1626 = vmatpush1.msra.mxu0 0.0
  %1627 = vmatprep.subr.mxu0 0.0
  %1628 = vmatpush1.msra.mxu0 0.0
  %1629 = vmatprep.subr.mxu0 0.0
  %1630 = vmatpush1.msra.mxu0 0.0
  %1631 = vmatprep.subr.mxu0 %v1599
  %1632 = vmatpush1.msra.mxu0 %v1596
  %1633 = vmatprep.subr.mxu0 0.0
  %1634 = vmatpush2.msra.mxu0 0.0
  %1635 = vmatprep.subr.mxu0 0.0
  %1636 = vmatpush2.msra.mxu0 0.0
  %1637 = vmatprep.subr.mxu0 0.0
  %1638 = vmatpush2.msra.mxu0 0.0
  %1639 = vmatprep.subr.mxu0 0.0
  %1640 = vmatpush2.msra.mxu0 0.0
  %1641 = vmatprep.subr.mxu0 0.0
  %1642 = vmatpush2.msra.mxu0 0.0
  %1643 = vmatprep.subr.mxu0 0.0
  %1644 = vmatpush2.msra.mxu0 0.0
  %1645 = vmatprep.subr.mxu0 0.0
  %1646 = vmatpush2.msra.mxu0 0.0
  %1647 = vmatprep.subr.mxu0 0.0
  %1648 = vmatpush2.msra.mxu0 0.0
  %1649 = vmatprep.subr.mxu0 0.0
  %1650 = vmatpush2.msra.mxu0 0.0
  %1651 = vmatprep.subr.mxu0 0.0
  %1652 = vmatpush2.msra.mxu0 0.0
  %1653 = vmatprep.subr.mxu0 0.0
  %1654 = vmatpush2.msra.mxu0 0.0
  %1655 = vmatprep.subr.mxu0 0.0
  %1656 = vmatpush2.msra.mxu0 0.0
  %1657 = vmatprep.subr.mxu0 0.0
  %1658 = vmatpush2.msra.mxu0 0.0
  %1659 = vmatprep.subr.mxu0 0.0
  %1660 = vmatpush2.msra.mxu0 0.0
  %1661 = vmatprep.subr.mxu0 0.0
  %1662 = vmatpush2.msra.mxu0 0.0
  %1663 = vmatprep.subr.mxu0 0.0
  %1664 = vmatpush2.msra.mxu0 0.0
  %1665 = vmatprep.mubr.f32.mxu0 0.0
  %1666 = vmatmul.mubr.f32.gmra.mxu0 %v700
  %v1667 = vpop.f32.mrf.mxu0
  %v1668 = vadd.f32 0.0, %v1667
  %v1669 = vpop.f32.mrf.mxu0
  %v1670 = vadd.f32 0.0, %v1669
  %1671 = vmatprep.mubr.f32.mxu0 0.0
  %1672 = vmatmul.mubr.f32.gmra.mxu0 %v703
  %v1673 = vpop.f32.mrf.mxu0
  %v1674 = vadd.f32 0.0, %v1673
  %v1675 = vpop.f32.mrf.mxu0
  %v1676 = vadd.f32 0.0, %v1675
  %1677 = vdwg.mxu0
  %v1678 = vadd.f32 %v1583, %v1668
  %v1679 = vadd.f32 %v1584, %v1670
  %v1680 = vadd.f32 %v1585, %v1674
  %v1681 = vadd.f32 %v1586, %v1676
  %1682 = vrot.lane.b32.xlu0 %v1031, 112
  %v1683 = vpop.permute.xlu0 %1682
  %1684 = vrot.lane.b32.xlu0 %v1033, 112
  %v1685 = vpop.permute.xlu0 %1684
  %v1686 = vsel %vm796, %v1683, %v1685
  %v1687 = vsel %vm796, %v1685, %v1683
  %v1688 = vmul.f32 %v1686, %v802
  %v1689 = vmul.f32 %v1687, %v806
  %v1691 = vsel %vm88, %v1688, 0
  %v1694 = vsel %vm88, %v1689, 0
  %1696 = vmatprep.subr.mxu0 0.0
  %1697 = vmatpush1.msra.mxu0 0.0
  %1698 = vmatprep.subr.mxu0 0.0
  %1699 = vmatpush1.msra.mxu0 0.0
  %1700 = vmatprep.subr.mxu0 0.0
  %1701 = vmatpush1.msra.mxu0 0.0
  %1702 = vmatprep.subr.mxu0 0.0
  %1703 = vmatpush1.msra.mxu0 0.0
  %1704 = vmatprep.subr.mxu0 0.0
  %1705 = vmatpush1.msra.mxu0 0.0
  %1706 = vmatprep.subr.mxu0 0.0
  %1707 = vmatpush1.msra.mxu0 0.0
  %1708 = vmatprep.subr.mxu0 0.0
  %1709 = vmatpush1.msra.mxu0 0.0
  %1710 = vmatprep.subr.mxu0 0.0
  %1711 = vmatpush1.msra.mxu0 0.0
  %1712 = vmatprep.subr.mxu0 0.0
  %1713 = vmatpush1.msra.mxu0 0.0
  %1714 = vmatprep.subr.mxu0 0.0
  %1715 = vmatpush1.msra.mxu0 0.0
  %1716 = vmatprep.subr.mxu0 0.0
  %1717 = vmatpush1.msra.mxu0 0.0
  %1718 = vmatprep.subr.mxu0 0.0
  %1719 = vmatpush1.msra.mxu0 0.0
  %1720 = vmatprep.subr.mxu0 0.0
  %1721 = vmatpush1.msra.mxu0 0.0
  %1722 = vmatprep.subr.mxu0 0.0
  %1723 = vmatpush1.msra.mxu0 0.0
  %1724 = vmatprep.subr.mxu0 0.0
  %1725 = vmatpush1.msra.mxu0 0.0
  %1726 = vmatprep.subr.mxu0 %v1694
  %1727 = vmatpush1.msra.mxu0 %v1691
  %1728 = vmatprep.subr.mxu0 0.0
  %1729 = vmatpush2.msra.mxu0 0.0
  %1730 = vmatprep.subr.mxu0 0.0
  %1731 = vmatpush2.msra.mxu0 0.0
  %1732 = vmatprep.subr.mxu0 0.0
  %1733 = vmatpush2.msra.mxu0 0.0
  %1734 = vmatprep.subr.mxu0 0.0
  %1735 = vmatpush2.msra.mxu0 0.0
  %1736 = vmatprep.subr.mxu0 0.0
  %1737 = vmatpush2.msra.mxu0 0.0
  %1738 = vmatprep.subr.mxu0 0.0
  %1739 = vmatpush2.msra.mxu0 0.0
  %1740 = vmatprep.subr.mxu0 0.0
  %1741 = vmatpush2.msra.mxu0 0.0
  %1742 = vmatprep.subr.mxu0 0.0
  %1743 = vmatpush2.msra.mxu0 0.0
  %1744 = vmatprep.subr.mxu0 0.0
  %1745 = vmatpush2.msra.mxu0 0.0
  %1746 = vmatprep.subr.mxu0 0.0
  %1747 = vmatpush2.msra.mxu0 0.0
  %1748 = vmatprep.subr.mxu0 0.0
  %1749 = vmatpush2.msra.mxu0 0.0
  %1750 = vmatprep.subr.mxu0 0.0
  %1751 = vmatpush2.msra.mxu0 0.0
  %1752 = vmatprep.subr.mxu0 0.0
  %1753 = vmatpush2.msra.mxu0 0.0
  %1754 = vmatprep.subr.mxu0 0.0
  %1755 = vmatpush2.msra.mxu0 0.0
  %1756 = vmatprep.subr.mxu0 0.0
  %1757 = vmatpush2.msra.mxu0 0.0
  %1758 = vmatprep.subr.mxu0 0.0
  %1759 = vmatpush2.msra.mxu0 0.0
  %1760 = vmatprep.mubr.f32.mxu0 0.0
  %1761 = vmatmul.mubr.f32.gmra.mxu0 %v810
  %v1762 = vpop.f32.mrf.mxu0
  %v1763 = vadd.f32 0.0, %v1762
  %v1764 = vpop.f32.mrf.mxu0
  %v1765 = vadd.f32 0.0, %v1764
  %1766 = vmatprep.mubr.f32.mxu0 0.0
  %1767 = vmatmul.mubr.f32.gmra.mxu0 %v813
  %v1768 = vpop.f32.mrf.mxu0
  %v1769 = vadd.f32 0.0, %v1768
  %v1770 = vpop.f32.mrf.mxu0
  %v1771 = vadd.f32 0.0, %v1770
  %1772 = vdwg.mxu0
  %v1773 = vadd.f32 %v1678, %v1763
  %v1774 = vadd.f32 %v1679, %v1765
  %v1775 = vadd.f32 %v1680, %v1769
  %v1776 = vadd.f32 %v1681, %v1771
  %1777 = vrot.lane.b32.xlu0 %v1031, 111
  %v1778 = vpop.permute.xlu0 %1777
  %1779 = vrot.lane.b32.xlu0 %v1033, 111
  %v1780 = vpop.permute.xlu0 %1779
  %v1781 = vsel %vm906, %v1778, %v1780
  %v1782 = vsel %vm906, %v1780, %v1778
  %v1783 = vmul.f32 %v1781, %v912
  %v1784 = vmul.f32 %v1782, %v916
  %v1786 = vsel %vm88, %v1783, 0
  %v1789 = vsel %vm88, %v1784, 0
  %1791 = vmatprep.subr.mxu0 0.0
  %1792 = vmatpush1.msra.mxu0 0.0
  %1793 = vmatprep.subr.mxu0 0.0
  %1794 = vmatpush1.msra.mxu0 0.0
  %1795 = vmatprep.subr.mxu0 0.0
  %1796 = vmatpush1.msra.mxu0 0.0
  %1797 = vmatprep.subr.mxu0 0.0
  %1798 = vmatpush1.msra.mxu0 0.0
  %1799 = vmatprep.subr.mxu0 0.0
  %1800 = vmatpush1.msra.mxu0 0.0
  %1801 = vmatprep.subr.mxu0 0.0
  %1802 = vmatpush1.msra.mxu0 0.0
  %1803 = vmatprep.subr.mxu0 0.0
  %1804 = vmatpush1.msra.mxu0 0.0
  %1805 = vmatprep.subr.mxu0 0.0
  %1806 = vmatpush1.msra.mxu0 0.0
  %1807 = vmatprep.subr.mxu0 0.0
  %1808 = vmatpush1.msra.mxu0 0.0
  %1809 = vmatprep.subr.mxu0 0.0
  %1810 = vmatpush1.msra.mxu0 0.0
  %1811 = vmatprep.subr.mxu0 0.0
  %1812 = vmatpush1.msra.mxu0 0.0
  %1813 = vmatprep.subr.mxu0 0.0
  %1814 = vmatpush1.msra.mxu0 0.0
  %1815 = vmatprep.subr.mxu0 0.0
  %1816 = vmatpush1.msra.mxu0 0.0
  %1817 = vmatprep.subr.mxu0 0.0
  %1818 = vmatpush1.msra.mxu0 0.0
  %1819 = vmatprep.subr.mxu0 0.0
  %1820 = vmatpush1.msra.mxu0 0.0
  %1821 = vmatprep.subr.mxu0 %v1789
  %1822 = vmatpush1.msra.mxu0 %v1786
  %1823 = vmatprep.subr.mxu0 0.0
  %1824 = vmatpush2.msra.mxu0 0.0
  %1825 = vmatprep.subr.mxu0 0.0
  %1826 = vmatpush2.msra.mxu0 0.0
  %1827 = vmatprep.subr.mxu0 0.0
  %1828 = vmatpush2.msra.mxu0 0.0
  %1829 = vmatprep.subr.mxu0 0.0
  %1830 = vmatpush2.msra.mxu0 0.0
  %1831 = vmatprep.subr.mxu0 0.0
  %1832 = vmatpush2.msra.mxu0 0.0
  %1833 = vmatprep.subr.mxu0 0.0
  %1834 = vmatpush2.msra.mxu0 0.0
  %1835 = vmatprep.subr.mxu0 0.0
  %1836 = vmatpush2.msra.mxu0 0.0
  %1837 = vmatprep.subr.mxu0 0.0
  %1838 = vmatpush2.msra.mxu0 0.0
  %1839 = vmatprep.subr.mxu0 0.0
  %1840 = vmatpush2.msra.mxu0 0.0
  %1841 = vmatprep.subr.mxu0 0.0
  %1842 = vmatpush2.msra.mxu0 0.0
  %1843 = vmatprep.subr.mxu0 0.0
  %1844 = vmatpush2.msra.mxu0 0.0
  %1845 = vmatprep.subr.mxu0 0.0
  %1846 = vmatpush2.msra.mxu0 0.0
  %1847 = vmatprep.subr.mxu0 0.0
  %1848 = vmatpush2.msra.mxu0 0.0
  %1849 = vmatprep.subr.mxu0 0.0
  %1850 = vmatpush2.msra.mxu0 0.0
  %1851 = vmatprep.subr.mxu0 0.0
  %1852 = vmatpush2.msra.mxu0 0.0
  %1853 = vmatprep.subr.mxu0 0.0
  %1854 = vmatpush2.msra.mxu0 0.0
  %1855 = vmatprep.mubr.f32.mxu0 0.0
  %1856 = vmatmul.mubr.f32.gmra.mxu0 %v920
  %v1857 = vpop.f32.mrf.mxu0
  %v1858 = vadd.f32 0.0, %v1857
  %v1859 = vpop.f32.mrf.mxu0
  %v1860 = vadd.f32 0.0, %v1859
  %1861 = vmatprep.mubr.f32.mxu0 0.0
  %1862 = vmatmul.mubr.f32.gmra.mxu0 %v923
  %v1863 = vpop.f32.mrf.mxu0
  %v1864 = vadd.f32 0.0, %v1863
  %v1865 = vpop.f32.mrf.mxu0
  %v1866 = vadd.f32 0.0, %v1865
  %1867 = vdwg.mxu0
  %v1868 = vadd.f32 %v1773, %v1858
  %v1869 = vadd.f32 %v1774, %v1860
  %v1870 = vadd.f32 %v1775, %v1864
  %v1871 = vadd.f32 %v1776, %v1866
  %v1872 = vadd.f32 %v1868, %v1015
  %v1873 = vadd.f32 %v1869, %v1015
  %v1874 = vadd.f32 %v1870, %v1020
  %v1875 = vadd.f32 %v1871, %v1020
  %s1876 = scalar_lea.vmem %s4, 32
  %1877 = vst [vmem:[%s1876] sm:$0xff] %v1872
  %1878 = vst [vmem:[%s1876 + $0x8] sm:$0xff] %v1873
  %1879 = vst [vmem:[%s1876 + $0x10] sm:$0xf] %v1874
  %1880 = vst [vmem:[%s1876 + $0x18] sm:$0xf] %v1875
  // Predicated region
  $region18: #{forward.1} parent=0 // pred_check
    _
  $region19: #{forward.1} parent=0 // pred_check_branch
    %1882 = sbr.rel (0) target = $region21
  $region20: #{forward.1} parent=0 // pred_region
    _
  $region21: #{forward.1} parent=0 // pred_fallthru
    _
  // Predicated region
  $region22: #{forward.1} parent=0 // pred_check
    _
  $region23: #{forward.1} parent=0 // pred_check_branch
    %1884 = sbr.rel (0) target = $region25
  $region24: #{forward.1} parent=0 // pred_region
    _
  $region25: #{forward.1} parent=0 // pred_fallthru
    _

</llo_original>
